<compile_context>
chip_gen: v7x
topology: tpu7x:2x2x1
jax: 0.10.0
libtpu: 0.0.40
codegen_flags: <defaults>
</compile_context>

<pallas_src>
import jax
import jax.numpy as jnp
from jax.experimental import pallas as pl
from jax.experimental.pallas import tpu as pltpu


def conv1x1_pad1(x_nchw, weight, bias, other):
    """x_nchw: (1, Cin, H, W) f32; weight: (Cout, Cin, 1, 1); bias: (Cout,);
    other: (1,1,1,1) int32 broadcast scalar.
    Returns (conv(x)+other, conv(x)) with padding=1, kernel=1, stride=1."""
    N, Cin, H, W = x_nchw.shape
    assert N == 1, "module spec uses batch size 1"
    Cout = weight.shape[0]
    Ho, Wo = H + 2, W + 2                    # padding=1, kernel=1, stride=1
    M = Ho * Wo                              # 66*66 = 4356 output pixels
    HW = H * W                               # 64*64 = 4096 (multiple of 128)

    # NCHW with N==1 is already channel-major: these reshapes are free views,
    # no transposes and (crucially) no separate pad op anywhere in the wrapper.
    x2d = x_nchw.reshape(Cin, HW).astype(jnp.float32)          # (3, 4096)
    w2d = weight.reshape(Cout, Cin).astype(jnp.float32)        # (8, 3)
    b2d = bias.reshape(Cout, 1).astype(jnp.float32)            # (8, 1)
    other2d = other.reshape(1, 1).astype(jnp.int32)            # (1, 1) -> SMEM

    def kernel(other_ref, w_ref, b_ref, x_ref, y_add_ref, y_ref, xp_ref):
        """other_ref: SMEM (1,1) i32; w_ref: VMEM (Cout,Cin); b_ref: VMEM (Cout,1);
        x_ref: VMEM (Cin, H*W); outputs: VMEM (Cout, Ho*Wo);
        xp_ref: VMEM scratch (Cin, Ho*Wo) = spatially zero-padded x."""
        # ---- 1) In-kernel spatial zero-pad (replaces wrapper jnp.pad) -------
        xp_ref[...] = jnp.zeros_like(xp_ref)         # borders (and all) <- 0
        for h in range(H):                           # 64 static row copies
            dst = (h + 1) * Wo + 1                   # static lane offset, row h+1, col 1
            xp_ref[:, dst:dst + W] = x_ref[:, h * W:(h + 1) * W]

        # ---- 2) 1x1 conv + bias as Cin VPU FMAs over (Cout, M) --------------
        # out[o, m] = b[o] + sum_c w[o, c] * xp[c, m]
        acc = b_ref[...]                              # (Cout, 1)
        for c in range(Cin):                          # Cin = 3, unrolled
            acc = acc + w_ref[:, c:c + 1] * xp_ref[c:c + 1, :]

        other_s = other_ref[0, 0].astype(jnp.float32)  # SMEM scalar read
        y_ref[...] = acc                               # v1 (one full store)
        y_add_ref[...] = acc + other_s                 # v1 + other

    y_add2d, y2d = pl.pallas_call(
        kernel,
        out_shape=(
            jax.ShapeDtypeStruct((Cout, M), jnp.float32),
            jax.ShapeDtypeStruct((Cout, M), jnp.float32),
        ),
        in_specs=[
            pl.BlockSpec(memory_space=pltpu.MemorySpace.SMEM),  # other scalar
            pl.BlockSpec((Cout, Cin), lambda: (0, 0)),          # W
            pl.BlockSpec((Cout, 1), lambda: (0, 0)),            # b
            pl.BlockSpec((Cin, HW), lambda: (0, 0)),            # x (lane-dense, unpadded)
        ],
        out_specs=(
            pl.BlockSpec((Cout, M), lambda: (0, 0)),            # v1 + other
            pl.BlockSpec((Cout, M), lambda: (0, 0)),            # v1
        ),
        scratch_shapes=[pltpu.VMEM((Cin, M), jnp.float32)],     # padded x
        cost_estimate=pl.CostEstimate(
            flops=2 * Cout * Cin * M,
            transcendentals=0,
            bytes_accessed=(Cin * HW + 2 * Cout * M) * 4,
        ),
    )(other2d, w2d, b2d, x2d)

    # (Cout, M) row-major is exactly channel-major NCHW: reshapes are free.
    y_add = y_add2d.reshape(N, Cout, Ho, Wo)
    y = y2d.reshape(N, Cout, Ho, Wo)
    return y_add, y


@jax.jit
def model_forward(x1, weight, bias, other):
    # other is an integer tensor (1,1,1,1); torch broadcasts it as a scalar add.
    v1_plus_other, v1 = conv1x1_pad1(x1, weight, bias, other)
    return v1_plus_other, v1, other


if __name__ == "__main__":
    key = jax.random.PRNGKey(0)
    k_x, k_w, k_b, k_o = jax.random.split(key, 4)

    # Input per the module: (1, 3, 64, 64)
    x1 = jax.random.normal(k_x, (1, 3, 64, 64), dtype=jnp.float32)

    # Deterministic Conv2d(3, 8, 1) params (synthetic init, not a checkpoint).
    Cin, Cout = 3, 8
    fan_in = Cin * 1 * 1
    bound = 1.0 / (fan_in ** 0.5)
    weight = jax.random.uniform(k_w, (Cout, Cin, 1, 1), jnp.float32, -bound, bound)
    bias = jax.random.uniform(k_b, (Cout,), jnp.float32, -bound, bound)

    # other = randint(0, 256, (1,1,1,1))  (int32 here; torch default is int64)
    other = jax.random.randint(k_o, (1, 1, 1, 1), 0, 256, dtype=jnp.int32)

    out_add, out_v1, out_other = model_forward(x1, weight, bias, other)
    jax.block_until_ready((out_add, out_v1, out_other))

    # Sanity check against a pure-JAX reference of the same math
    # (the pad here is reference-only; the kernel path has no pad op).
    x_pad_ref = jnp.pad(x1, ((0, 0), (0, 0), (1, 1), (1, 1)))
    v1_ref = jnp.einsum("nchw,oc->nohw", x_pad_ref, weight.reshape(Cout, Cin)) \
        + bias.reshape(1, Cout, 1, 1)
    assert out_v1.shape == (1, 8, 66, 66)
    assert out_add.shape == (1, 8, 66, 66)
    assert jnp.allclose(out_v1, v1_ref, atol=1e-4, rtol=1e-4)
    assert jnp.allclose(out_add, v1_ref + other.astype(jnp.float32), atol=1e-4, rtol=1e-4)
    assert jnp.array_equal(out_other, other)

    print("KERNEL_OK")
</pallas_src>

<mosaic_0001>
module attributes {stable_mosaic.version = 11 : i64} {
  func.func @kernel(%arg0: memref<1x1xi32, #tpu.memory_space<smem>>, %arg1: memref<8x3xf32, #tpu.memory_space<vmem>>, %arg2: memref<8x1xf32, #tpu.memory_space<vmem>>, %arg3: memref<3x4096xf32, #tpu.memory_space<vmem>>, %arg4: memref<8x4356xf32, #tpu.memory_space<vmem>>, %arg5: memref<8x4356xf32, #tpu.memory_space<vmem>>, %arg6: memref<3x4356xf32, #tpu.memory_space<vmem>>) attributes {dimension_semantics = [], scalar_prefetch = 0 : i64, scratch_operands = 1 : i64, tpu.core_type = #tpu.core_type<tc>} {
    %cst = arith.constant 0.000000e+00 : f32
    %0 = vector.broadcast %cst : f32 to vector<3x4356xf32>
    %c0 = arith.constant 0 : index
    %c0_0 = arith.constant 0 : index
    %1 = vector.load %arg6[%c0, %c0_0] : memref<3x4356xf32, #tpu.memory_space<vmem>>, vector<3x4356xf32>
    tpu.vector_store %arg6[%c0, %c0_0], %0 {strides = array<i32>} : memref<3x4356xf32, #tpu.memory_space<vmem>>, vector<3x4356xf32>,
    %c0_1 = arith.constant 0 : index
    %c0_2 = arith.constant 0 : index
    %2 = vector.load %arg3[%c0_1, %c0_2] : memref<3x4096xf32, #tpu.memory_space<vmem>>, vector<3x64xf32>
    %c0_3 = arith.constant 0 : index
    %c67 = arith.constant 67 : index
    %3 = vector.load %arg6[%c0_3, %c67] : memref<3x4356xf32, #tpu.memory_space<vmem>>, vector<3x64xf32>
    tpu.vector_store %arg6[%c0_3, %c67], %2 {strides = array<i32>} : memref<3x4356xf32, #tpu.memory_space<vmem>>, vector<3x64xf32>,
    %c0_4 = arith.constant 0 : index
    %c64 = arith.constant 64 : index
    %4 = vector.load %arg3[%c0_4, %c64] : memref<3x4096xf32, #tpu.memory_space<vmem>>, vector<3x64xf32>
    %c0_5 = arith.constant 0 : index
    %c133 = arith.constant 133 : index
    %5 = vector.load %arg6[%c0_5, %c133] : memref<3x4356xf32, #tpu.memory_space<vmem>>, vector<3x64xf32>
    tpu.vector_store %arg6[%c0_5, %c133], %4 {strides = array<i32>} : memref<3x4356xf32, #tpu.memory_space<vmem>>, vector<3x64xf32>,
    %c0_6 = arith.constant 0 : index
    %c128 = arith.constant 128 : index
    %6 = vector.load %arg3[%c0_6, %c128] : memref<3x4096xf32, #tpu.memory_space<vmem>>, vector<3x64xf32>
    %c0_7 = arith.constant 0 : index
    %c199 = arith.constant 199 : index
    %7 = vector.load %arg6[%c0_7, %c199] : memref<3x4356xf32, #tpu.memory_space<vmem>>, vector<3x64xf32>
    tpu.vector_store %arg6[%c0_7, %c199], %6 {strides = array<i32>} : memref<3x4356xf32, #tpu.memory_space<vmem>>, vector<3x64xf32>,
    %c0_8 = arith.constant 0 : index
    %c192 = arith.constant 192 : index
    %8 = vector.load %arg3[%c0_8, %c192] : memref<3x4096xf32, #tpu.memory_space<vmem>>, vector<3x64xf32>
    %c0_9 = arith.constant 0 : index
    %c265 = arith.constant 265 : index
    %9 = vector.load %arg6[%c0_9, %c265] : memref<3x4356xf32, #tpu.memory_space<vmem>>, vector<3x64xf32>
    tpu.vector_store %arg6[%c0_9, %c265], %8 {strides = array<i32>} : memref<3x4356xf32, #tpu.memory_space<vmem>>, vector<3x64xf32>,
    %c0_10 = arith.constant 0 : index
    %c256 = arith.constant 256 : index
    %10 = vector.load %arg3[%c0_10, %c256] : memref<3x4096xf32, #tpu.memory_space<vmem>>, vector<3x64xf32>
    %c0_11 = arith.constant 0 : index
    %c331 = arith.constant 331 : index
    %11 = vector.load %arg6[%c0_11, %c331] : memref<3x4356xf32, #tpu.memory_space<vmem>>, vector<3x64xf32>
    tpu.vector_store %arg6[%c0_11, %c331], %10 {strides = array<i32>} : memref<3x4356xf32, #tpu.memory_space<vmem>>, vector<3x64xf32>,
    %c0_12 = arith.constant 0 : index
    %c320 = arith.constant 320 : index
    %12 = vector.load %arg3[%c0_12, %c320] : memref<3x4096xf32, #tpu.memory_space<vmem>>, vector<3x64xf32>
    %c0_13 = arith.constant 0 : index
    %c397 = arith.constant 397 : index
    %13 = vector.load %arg6[%c0_13, %c397] : memref<3x4356xf32, #tpu.memory_space<vmem>>, vector<3x64xf32>
    tpu.vector_store %arg6[%c0_13, %c397], %12 {strides = array<i32>} : memref<3x4356xf32, #tpu.memory_space<vmem>>, vector<3x64xf32>,
    %c0_14 = arith.constant 0 : index
    %c384 = arith.constant 384 : index
    %14 = vector.load %arg3[%c0_14, %c384] : memref<3x4096xf32, #tpu.memory_space<vmem>>, vector<3x64xf32>
    %c0_15 = arith.constant 0 : index
    %c463 = arith.constant 463 : index
    %15 = vector.load %arg6[%c0_15, %c463] : memref<3x4356xf32, #tpu.memory_space<vmem>>, vector<3x64xf32>
    tpu.vector_store %arg6[%c0_15, %c463], %14 {strides = array<i32>} : memref<3x4356xf32, #tpu.memory_space<vmem>>, vector<3x64xf32>,
    %c0_16 = arith.constant 0 : index
    %c448 = arith.constant 448 : index
    %16 = vector.load %arg3[%c0_16, %c448] : memref<3x4096xf32, #tpu.memory_space<vmem>>, vector<3x64xf32>
    %c0_17 = arith.constant 0 : index
    %c529 = arith.constant 529 : index
    %17 = vector.load %arg6[%c0_17, %c529] : memref<3x4356xf32, #tpu.memory_space<vmem>>, vector<3x64xf32>
    tpu.vector_store %arg6[%c0_17, %c529], %16 {strides = array<i32>} : memref<3x4356xf32, #tpu.memory_space<vmem>>, vector<3x64xf32>,
    %c0_18 = arith.constant 0 : index
    %c512 = arith.constant 512 : index
    %18 = vector.load %arg3[%c0_18, %c512] : memref<3x4096xf32, #tpu.memory_space<vmem>>, vector<3x64xf32>
    %c0_19 = arith.constant 0 : index
    %c595 = arith.constant 595 : index
    %19 = vector.load %arg6[%c0_19, %c595] : memref<3x4356xf32, #tpu.memory_space<vmem>>, vector<3x64xf32>
    tpu.vector_store %arg6[%c0_19, %c595], %18 {strides = array<i32>} : memref<3x4356xf32, #tpu.memory_space<vmem>>, vector<3x64xf32>,
    %c0_20 = arith.constant 0 : index
    %c576 = arith.constant 576 : index
    %20 = vector.load %arg3[%c0_20, %c576] : memref<3x4096xf32, #tpu.memory_space<vmem>>, vector<3x64xf32>
    %c0_21 = arith.constant 0 : index
    %c661 = arith.constant 661 : index
    %21 = vector.load %arg6[%c0_21, %c661] : memref<3x4356xf32, #tpu.memory_space<vmem>>, vector<3x64xf32>
    tpu.vector_store %arg6[%c0_21, %c661], %20 {strides = array<i32>} : memref<3x4356xf32, #tpu.memory_space<vmem>>, vector<3x64xf32>,
    %c0_22 = arith.constant 0 : index
    %c640 = arith.constant 640 : index
    %22 = vector.load %arg3[%c0_22, %c640] : memref<3x4096xf32, #tpu.memory_space<vmem>>, vector<3x64xf32>
    %c0_23 = arith.constant 0 : index
    %c727 = arith.constant 727 : index
    %23 = vector.load %arg6[%c0_23, %c727] : memref<3x4356xf32, #tpu.memory_space<vmem>>, vector<3x64xf32>
    tpu.vector_store %arg6[%c0_23, %c727], %22 {strides = array<i32>} : memref<3x4356xf32, #tpu.memory_space<vmem>>, vector<3x64xf32>,
    %c0_24 = arith.constant 0 : index
    %c704 = arith.constant 704 : index
    %24 = vector.load %arg3[%c0_24, %c704] : memref<3x4096xf32, #tpu.memory_space<vmem>>, vector<3x64xf32>
    %c0_25 = arith.constant 0 : index
    %c793 = arith.constant 793 : index
    %25 = vector.load %arg6[%c0_25, %c793] : memref<3x4356xf32, #tpu.memory_space<vmem>>, vector<3x64xf32>
    tpu.vector_store %arg6[%c0_25, %c793], %24 {strides = array<i32>} : memref<3x4356xf32, #tpu.memory_space<vmem>>, vector<3x64xf32>,
    %c0_26 = arith.constant 0 : index
    %c768 = arith.constant 768 : index
    %26 = vector.load %arg3[%c0_26, %c768] : memref<3x4096xf32, #tpu.memory_space<vmem>>, vector<3x64xf32>
    %c0_27 = arith.constant 0 : index
    %c859 = arith.constant 859 : index
    %27 = vector.load %arg6[%c0_27, %c859] : memref<3x4356xf32, #tpu.memory_space<vmem>>, vector<3x64xf32>
    tpu.vector_store %arg6[%c0_27, %c859], %26 {strides = array<i32>} : memref<3x4356xf32, #tpu.memory_space<vmem>>, vector<3x64xf32>,
    %c0_28 = arith.constant 0 : index
    %c832 = arith.constant 832 : index
    %28 = vector.load %arg3[%c0_28, %c832] : memref<3x4096xf32, #tpu.memory_space<vmem>>, vector<3x64xf32>
    %c0_29 = arith.constant 0 : index
    %c925 = arith.constant 925 : index
    %29 = vector.load %arg6[%c0_29, %c925] : memref<3x4356xf32, #tpu.memory_space<vmem>>, vector<3x64xf32>
    tpu.vector_store %arg6[%c0_29, %c925], %28 {strides = array<i32>} : memref<3x4356xf32, #tpu.memory_space<vmem>>, vector<3x64xf32>,
    %c0_30 = arith.constant 0 : index
    %c896 = arith.constant 896 : index
    %30 = vector.load %arg3[%c0_30, %c896] : memref<3x4096xf32, #tpu.memory_space<vmem>>, vector<3x64xf32>
    %c0_31 = arith.constant 0 : index
    %c991 = arith.constant 991 : index
    %31 = vector.load %arg6[%c0_31, %c991] : memref<3x4356xf32, #tpu.memory_space<vmem>>, vector<3x64xf32>
    tpu.vector_store %arg6[%c0_31, %c991], %30 {strides = array<i32>} : memref<3x4356xf32, #tpu.memory_space<vmem>>, vector<3x64xf32>,
    %c0_32 = arith.constant 0 : index
    %c960 = arith.constant 960 : index
    %32 = vector.load %arg3[%c0_32, %c960] : memref<3x4096xf32, #tpu.memory_space<vmem>>, vector<3x64xf32>
    %c0_33 = arith.constant 0 : index
    %c1057 = arith.constant 1057 : index
    %33 = vector.load %arg6[%c0_33, %c1057] : memref<3x4356xf32, #tpu.memory_space<vmem>>, vector<3x64xf32>
    tpu.vector_store %arg6[%c0_33, %c1057], %32 {strides = array<i32>} : memref<3x4356xf32, #tpu.memory_space<vmem>>, vector<3x64xf32>,
    %c0_34 = arith.constant 0 : index
    %c1024 = arith.constant 1024 : index
    %34 = vector.load %arg3[%c0_34, %c1024] : memref<3x4096xf32, #tpu.memory_space<vmem>>, vector<3x64xf32>
    %c0_35 = arith.constant 0 : index
    %c1123 = arith.constant 1123 : index
    %35 = vector.load %arg6[%c0_35, %c1123] : memref<3x4356xf32, #tpu.memory_space<vmem>>, vector<3x64xf32>
    tpu.vector_store %arg6[%c0_35, %c1123], %34 {strides = array<i32>} : memref<3x4356xf32, #tpu.memory_space<vmem>>, vector<3x64xf32>,
    %c0_36 = arith.constant 0 : index
    %c1088 = arith.constant 1088 : index
    %36 = vector.load %arg3[%c0_36, %c1088] : memref<3x4096xf32, #tpu.memory_space<vmem>>, vector<3x64xf32>
    %c0_37 = arith.constant 0 : index
    %c1189 = arith.constant 1189 : index
    %37 = vector.load %arg6[%c0_37, %c1189] : memref<3x4356xf32, #tpu.memory_space<vmem>>, vector<3x64xf32>
    tpu.vector_store %arg6[%c0_37, %c1189], %36 {strides = array<i32>} : memref<3x4356xf32, #tpu.memory_space<vmem>>, vector<3x64xf32>,
    %c0_38 = arith.constant 0 : index
    %c1152 = arith.constant 1152 : index
    %38 = vector.load %arg3[%c0_38, %c1152] : memref<3x4096xf32, #tpu.memory_space<vmem>>, vector<3x64xf32>
    %c0_39 = arith.constant 0 : index
    %c1255 = arith.constant 1255 : index
    %39 = vector.load %arg6[%c0_39, %c1255] : memref<3x4356xf32, #tpu.memory_space<vmem>>, vector<3x64xf32>
    tpu.vector_store %arg6[%c0_39, %c1255], %38 {strides = array<i32>} : memref<3x4356xf32, #tpu.memory_space<vmem>>, vector<3x64xf32>,
    %c0_40 = arith.constant 0 : index
    %c1216 = arith.constant 1216 : index
    %40 = vector.load %arg3[%c0_40, %c1216] : memref<3x4096xf32, #tpu.memory_space<vmem>>, vector<3x64xf32>
    %c0_41 = arith.constant 0 : index
    %c1321 = arith.constant 1321 : index
    %41 = vector.load %arg6[%c0_41, %c1321] : memref<3x4356xf32, #tpu.memory_space<vmem>>, vector<3x64xf32>
    tpu.vector_store %arg6[%c0_41, %c1321], %40 {strides = array<i32>} : memref<3x4356xf32, #tpu.memory_space<vmem>>, vector<3x64xf32>,
    %c0_42 = arith.constant 0 : index
    %c1280 = arith.constant 1280 : index
    %42 = vector.load %arg3[%c0_42, %c1280] : memref<3x4096xf32, #tpu.memory_space<vmem>>, vector<3x64xf32>
    %c0_43 = arith.constant 0 : index
    %c1387 = arith.constant 1387 : index
    %43 = vector.load %arg6[%c0_43, %c1387] : memref<3x4356xf32, #tpu.memory_space<vmem>>, vector<3x64xf32>
    tpu.vector_store %arg6[%c0_43, %c1387], %42 {strides = array<i32>} : memref<3x4356xf32, #tpu.memory_space<vmem>>, vector<3x64xf32>,
    %c0_44 = arith.constant 0 : index
    %c1344 = arith.constant 1344 : index
    %44 = vector.load %arg3[%c0_44, %c1344] : memref<3x4096xf32, #tpu.memory_space<vmem>>, vector<3x64xf32>
    %c0_45 = arith.constant 0 : index
    %c1453 = arith.constant 1453 : index
    %45 = vector.load %arg6[%c0_45, %c1453] : memref<3x4356xf32, #tpu.memory_space<vmem>>, vector<3x64xf32>
    tpu.vector_store %arg6[%c0_45, %c1453], %44 {strides = array<i32>} : memref<3x4356xf32, #tpu.memory_space<vmem>>, vector<3x64xf32>,
    %c0_46 = arith.constant 0 : index
    %c1408 = arith.constant 1408 : index
    %46 = vector.load %arg3[%c0_46, %c1408] : memref<3x4096xf32, #tpu.memory_space<vmem>>, vector<3x64xf32>
    %c0_47 = arith.constant 0 : index
    %c1519 = arith.constant 1519 : index
    %47 = vector.load %arg6[%c0_47, %c1519] : memref<3x4356xf32, #tpu.memory_space<vmem>>, vector<3x64xf32>
    tpu.vector_store %arg6[%c0_47, %c1519], %46 {strides = array<i32>} : memref<3x4356xf32, #tpu.memory_space<vmem>>, vector<3x64xf32>,
    %c0_48 = arith.constant 0 : index
    %c1472 = arith.constant 1472 : index
    %48 = vector.load %arg3[%c0_48, %c1472] : memref<3x4096xf32, #tpu.memory_space<vmem>>, vector<3x64xf32>
    %c0_49 = arith.constant 0 : index
    %c1585 = arith.constant 1585 : index
    %49 = vector.load %arg6[%c0_49, %c1585] : memref<3x4356xf32, #tpu.memory_space<vmem>>, vector<3x64xf32>
    tpu.vector_store %arg6[%c0_49, %c1585], %48 {strides = array<i32>} : memref<3x4356xf32, #tpu.memory_space<vmem>>, vector<3x64xf32>,
    %c0_50 = arith.constant 0 : index
    %c1536 = arith.constant 1536 : index
    %50 = vector.load %arg3[%c0_50, %c1536] : memref<3x4096xf32, #tpu.memory_space<vmem>>, vector<3x64xf32>
    %c0_51 = arith.constant 0 : index
    %c1651 = arith.constant 1651 : index
    %51 = vector.load %arg6[%c0_51, %c1651] : memref<3x4356xf32, #tpu.memory_space<vmem>>, vector<3x64xf32>
    tpu.vector_store %arg6[%c0_51, %c1651], %50 {strides = array<i32>} : memref<3x4356xf32, #tpu.memory_space<vmem>>, vector<3x64xf32>,
    %c0_52 = arith.constant 0 : index
    %c1600 = arith.constant 1600 : index
    %52 = vector.load %arg3[%c0_52, %c1600] : memref<3x4096xf32, #tpu.memory_space<vmem>>, vector<3x64xf32>
    %c0_53 = arith.constant 0 : index
    %c1717 = arith.constant 1717 : index
    %53 = vector.load %arg6[%c0_53, %c1717] : memref<3x4356xf32, #tpu.memory_space<vmem>>, vector<3x64xf32>
    tpu.vector_store %arg6[%c0_53, %c1717], %52 {strides = array<i32>} : memref<3x4356xf32, #tpu.memory_space<vmem>>, vector<3x64xf32>,
    %c0_54 = arith.constant 0 : index
    %c1664 = arith.constant 1664 : index
    %54 = vector.load %arg3[%c0_54, %c1664] : memref<3x4096xf32, #tpu.memory_space<vmem>>, vector<3x64xf32>
    %c0_55 = arith.constant 0 : index
    %c1783 = arith.constant 1783 : index
    %55 = vector.load %arg6[%c0_55, %c1783] : memref<3x4356xf32, #tpu.memory_space<vmem>>, vector<3x64xf32>
    tpu.vector_store %arg6[%c0_55, %c1783], %54 {strides = array<i32>} : memref<3x4356xf32, #tpu.memory_space<vmem>>, vector<3x64xf32>,
    %c0_56 = arith.constant 0 : index
    %c1728 = arith.constant 1728 : index
    %56 = vector.load %arg3[%c0_56, %c1728] : memref<3x4096xf32, #tpu.memory_space<vmem>>, vector<3x64xf32>
    %c0_57 = arith.constant 0 : index
    %c1849 = arith.constant 1849 : index
    %57 = vector.load %arg6[%c0_57, %c1849] : memref<3x4356xf32, #tpu.memory_space<vmem>>, vector<3x64xf32>
    tpu.vector_store %arg6[%c0_57, %c1849], %56 {strides = array<i32>} : memref<3x4356xf32, #tpu.memory_space<vmem>>, vector<3x64xf32>,
    %c0_58 = arith.constant 0 : index
    %c1792 = arith.constant 1792 : index
    %58 = vector.load %arg3[%c0_58, %c1792] : memref<3x4096xf32, #tpu.memory_space<vmem>>, vector<3x64xf32>
    %c0_59 = arith.constant 0 : index
    %c1915 = arith.constant 1915 : index
    %59 = vector.load %arg6[%c0_59, %c1915] : memref<3x4356xf32, #tpu.memory_space<vmem>>, vector<3x64xf32>
    tpu.vector_store %arg6[%c0_59, %c1915], %58 {strides = array<i32>} : memref<3x4356xf32, #tpu.memory_space<vmem>>, vector<3x64xf32>,
    %c0_60 = arith.constant 0 : index
    %c1856 = arith.constant 1856 : index
    %60 = vector.load %arg3[%c0_60, %c1856] : memref<3x4096xf32, #tpu.memory_space<vmem>>, vector<3x64xf32>
    %c0_61 = arith.constant 0 : index
    %c1981 = arith.constant 1981 : index
    %61 = vector.load %arg6[%c0_61, %c1981] : memref<3x4356xf32, #tpu.memory_space<vmem>>, vector<3x64xf32>
    tpu.vector_store %arg6[%c0_61, %c1981], %60 {strides = array<i32>} : memref<3x4356xf32, #tpu.memory_space<vmem>>, vector<3x64xf32>,
    %c0_62 = arith.constant 0 : index
    %c1920 = arith.constant 1920 : index
    %62 = vector.load %arg3[%c0_62, %c1920] : memref<3x4096xf32, #tpu.memory_space<vmem>>, vector<3x64xf32>
    %c0_63 = arith.constant 0 : index
    %c2047 = arith.constant 2047 : index
    %63 = vector.load %arg6[%c0_63, %c2047] : memref<3x4356xf32, #tpu.memory_space<vmem>>, vector<3x64xf32>
    tpu.vector_store %arg6[%c0_63, %c2047], %62 {strides = array<i32>} : memref<3x4356xf32, #tpu.memory_space<vmem>>, vector<3x64xf32>,
    %c0_64 = arith.constant 0 : index
    %c1984 = arith.constant 1984 : index
    %64 = vector.load %arg3[%c0_64, %c1984] : memref<3x4096xf32, #tpu.memory_space<vmem>>, vector<3x64xf32>
    %c0_65 = arith.constant 0 : index
    %c2113 = arith.constant 2113 : index
    %65 = vector.load %arg6[%c0_65, %c2113] : memref<3x4356xf32, #tpu.memory_space<vmem>>, vector<3x64xf32>
    tpu.vector_store %arg6[%c0_65, %c2113], %64 {strides = array<i32>} : memref<3x4356xf32, #tpu.memory_space<vmem>>, vector<3x64xf32>,
    %c0_66 = arith.constant 0 : index
    %c2048 = arith.constant 2048 : index
    %66 = vector.load %arg3[%c0_66, %c2048] : memref<3x4096xf32, #tpu.memory_space<vmem>>, vector<3x64xf32>
    %c0_67 = arith.constant 0 : index
    %c2179 = arith.constant 2179 : index
    %67 = vector.load %arg6[%c0_67, %c2179] : memref<3x4356xf32, #tpu.memory_space<vmem>>, vector<3x64xf32>
    tpu.vector_store %arg6[%c0_67, %c2179], %66 {strides = array<i32>} : memref<3x4356xf32, #tpu.memory_space<vmem>>, vector<3x64xf32>,
    %c0_68 = arith.constant 0 : index
    %c2112 = arith.constant 2112 : index
    %68 = vector.load %arg3[%c0_68, %c2112] : memref<3x4096xf32, #tpu.memory_space<vmem>>, vector<3x64xf32>
    %c0_69 = arith.constant 0 : index
    %c2245 = arith.constant 2245 : index
    %69 = vector.load %arg6[%c0_69, %c2245] : memref<3x4356xf32, #tpu.memory_space<vmem>>, vector<3x64xf32>
    tpu.vector_store %arg6[%c0_69, %c2245], %68 {strides = array<i32>} : memref<3x4356xf32, #tpu.memory_space<vmem>>, vector<3x64xf32>,
    %c0_70 = arith.constant 0 : index
    %c2176 = arith.constant 2176 : index
    %70 = vector.load %arg3[%c0_70, %c2176] : memref<3x4096xf32, #tpu.memory_space<vmem>>, vector<3x64xf32>
    %c0_71 = arith.constant 0 : index
    %c2311 = arith.constant 2311 : index
    %71 = vector.load %arg6[%c0_71, %c2311] : memref<3x4356xf32, #tpu.memory_space<vmem>>, vector<3x64xf32>
    tpu.vector_store %arg6[%c0_71, %c2311], %70 {strides = array<i32>} : memref<3x4356xf32, #tpu.memory_space<vmem>>, vector<3x64xf32>,
    %c0_72 = arith.constant 0 : index
    %c2240 = arith.constant 2240 : index
    %72 = vector.load %arg3[%c0_72, %c2240] : memref<3x4096xf32, #tpu.memory_space<vmem>>, vector<3x64xf32>
    %c0_73 = arith.constant 0 : index
    %c2377 = arith.constant 2377 : index
    %73 = vector.load %arg6[%c0_73, %c2377] : memref<3x4356xf32, #tpu.memory_space<vmem>>, vector<3x64xf32>
    tpu.vector_store %arg6[%c0_73, %c2377], %72 {strides = array<i32>} : memref<3x4356xf32, #tpu.memory_space<vmem>>, vector<3x64xf32>,
    %c0_74 = arith.constant 0 : index
    %c2304 = arith.constant 2304 : index
    %74 = vector.load %arg3[%c0_74, %c2304] : memref<3x4096xf32, #tpu.memory_space<vmem>>, vector<3x64xf32>
    %c0_75 = arith.constant 0 : index
    %c2443 = arith.constant 2443 : index
    %75 = vector.load %arg6[%c0_75, %c2443] : memref<3x4356xf32, #tpu.memory_space<vmem>>, vector<3x64xf32>
    tpu.vector_store %arg6[%c0_75, %c2443], %74 {strides = array<i32>} : memref<3x4356xf32, #tpu.memory_space<vmem>>, vector<3x64xf32>,
    %c0_76 = arith.constant 0 : index
    %c2368 = arith.constant 2368 : index
    %76 = vector.load %arg3[%c0_76, %c2368] : memref<3x4096xf32, #tpu.memory_space<vmem>>, vector<3x64xf32>
    %c0_77 = arith.constant 0 : index
    %c2509 = arith.constant 2509 : index
    %77 = vector.load %arg6[%c0_77, %c2509] : memref<3x4356xf32, #tpu.memory_space<vmem>>, vector<3x64xf32>
    tpu.vector_store %arg6[%c0_77, %c2509], %76 {strides = array<i32>} : memref<3x4356xf32, #tpu.memory_space<vmem>>, vector<3x64xf32>,
    %c0_78 = arith.constant 0 : index
    %c2432 = arith.constant 2432 : index
    %78 = vector.load %arg3[%c0_78, %c2432] : memref<3x4096xf32, #tpu.memory_space<vmem>>, vector<3x64xf32>
    %c0_79 = arith.constant 0 : index
    %c2575 = arith.constant 2575 : index
    %79 = vector.load %arg6[%c0_79, %c2575] : memref<3x4356xf32, #tpu.memory_space<vmem>>, vector<3x64xf32>
    tpu.vector_store %arg6[%c0_79, %c2575], %78 {strides = array<i32>} : memref<3x4356xf32, #tpu.memory_space<vmem>>, vector<3x64xf32>,
    %c0_80 = arith.constant 0 : index
    %c2496 = arith.constant 2496 : index
    %80 = vector.load %arg3[%c0_80, %c2496] : memref<3x4096xf32, #tpu.memory_space<vmem>>, vector<3x64xf32>
    %c0_81 = arith.constant 0 : index
    %c2641 = arith.constant 2641 : index
    %81 = vector.load %arg6[%c0_81, %c2641] : memref<3x4356xf32, #tpu.memory_space<vmem>>, vector<3x64xf32>
    tpu.vector_store %arg6[%c0_81, %c2641], %80 {strides = array<i32>} : memref<3x4356xf32, #tpu.memory_space<vmem>>, vector<3x64xf32>,
    %c0_82 = arith.constant 0 : index
    %c2560 = arith.constant 2560 : index
    %82 = vector.load %arg3[%c0_82, %c2560] : memref<3x4096xf32, #tpu.memory_space<vmem>>, vector<3x64xf32>
    %c0_83 = arith.constant 0 : index
    %c2707 = arith.constant 2707 : index
    %83 = vector.load %arg6[%c0_83, %c2707] : memref<3x4356xf32, #tpu.memory_space<vmem>>, vector<3x64xf32>
    tpu.vector_store %arg6[%c0_83, %c2707], %82 {strides = array<i32>} : memref<3x4356xf32, #tpu.memory_space<vmem>>, vector<3x64xf32>,
    %c0_84 = arith.constant 0 : index
    %c2624 = arith.constant 2624 : index
    %84 = vector.load %arg3[%c0_84, %c2624] : memref<3x4096xf32, #tpu.memory_space<vmem>>, vector<3x64xf32>
    %c0_85 = arith.constant 0 : index
    %c2773 = arith.constant 2773 : index
    %85 = vector.load %arg6[%c0_85, %c2773] : memref<3x4356xf32, #tpu.memory_space<vmem>>, vector<3x64xf32>
    tpu.vector_store %arg6[%c0_85, %c2773], %84 {strides = array<i32>} : memref<3x4356xf32, #tpu.memory_space<vmem>>, vector<3x64xf32>,
    %c0_86 = arith.constant 0 : index
    %c2688 = arith.constant 2688 : index
    %86 = vector.load %arg3[%c0_86, %c2688] : memref<3x4096xf32, #tpu.memory_space<vmem>>, vector<3x64xf32>
    %c0_87 = arith.constant 0 : index
    %c2839 = arith.constant 2839 : index
    %87 = vector.load %arg6[%c0_87, %c2839] : memref<3x4356xf32, #tpu.memory_space<vmem>>, vector<3x64xf32>
    tpu.vector_store %arg6[%c0_87, %c2839], %86 {strides = array<i32>} : memref<3x4356xf32, #tpu.memory_space<vmem>>, vector<3x64xf32>,
    %c0_88 = arith.constant 0 : index
    %c2752 = arith.constant 2752 : index
    %88 = vector.load %arg3[%c0_88, %c2752] : memref<3x4096xf32, #tpu.memory_space<vmem>>, vector<3x64xf32>
    %c0_89 = arith.constant 0 : index
    %c2905 = arith.constant 2905 : index
    %89 = vector.load %arg6[%c0_89, %c2905] : memref<3x4356xf32, #tpu.memory_space<vmem>>, vector<3x64xf32>
    tpu.vector_store %arg6[%c0_89, %c2905], %88 {strides = array<i32>} : memref<3x4356xf32, #tpu.memory_space<vmem>>, vector<3x64xf32>,
    %c0_90 = arith.constant 0 : index
    %c2816 = arith.constant 2816 : index
    %90 = vector.load %arg3[%c0_90, %c2816] : memref<3x4096xf32, #tpu.memory_space<vmem>>, vector<3x64xf32>
    %c0_91 = arith.constant 0 : index
    %c2971 = arith.constant 2971 : index
    %91 = vector.load %arg6[%c0_91, %c2971] : memref<3x4356xf32, #tpu.memory_space<vmem>>, vector<3x64xf32>
    tpu.vector_store %arg6[%c0_91, %c2971], %90 {strides = array<i32>} : memref<3x4356xf32, #tpu.memory_space<vmem>>, vector<3x64xf32>,
    %c0_92 = arith.constant 0 : index
    %c2880 = arith.constant 2880 : index
    %92 = vector.load %arg3[%c0_92, %c2880] : memref<3x4096xf32, #tpu.memory_space<vmem>>, vector<3x64xf32>
    %c0_93 = arith.constant 0 : index
    %c3037 = arith.constant 3037 : index
    %93 = vector.load %arg6[%c0_93, %c3037] : memref<3x4356xf32, #tpu.memory_space<vmem>>, vector<3x64xf32>
    tpu.vector_store %arg6[%c0_93, %c3037], %92 {strides = array<i32>} : memref<3x4356xf32, #tpu.memory_space<vmem>>, vector<3x64xf32>,
    %c0_94 = arith.constant 0 : index
    %c2944 = arith.constant 2944 : index
    %94 = vector.load %arg3[%c0_94, %c2944] : memref<3x4096xf32, #tpu.memory_space<vmem>>, vector<3x64xf32>
    %c0_95 = arith.constant 0 : index
    %c3103 = arith.constant 3103 : index
    %95 = vector.load %arg6[%c0_95, %c3103] : memref<3x4356xf32, #tpu.memory_space<vmem>>, vector<3x64xf32>
    tpu.vector_store %arg6[%c0_95, %c3103], %94 {strides = array<i32>} : memref<3x4356xf32, #tpu.memory_space<vmem>>, vector<3x64xf32>,
    %c0_96 = arith.constant 0 : index
    %c3008 = arith.constant 3008 : index
    %96 = vector.load %arg3[%c0_96, %c3008] : memref<3x4096xf32, #tpu.memory_space<vmem>>, vector<3x64xf32>
    %c0_97 = arith.constant 0 : index
    %c3169 = arith.constant 3169 : index
    %97 = vector.load %arg6[%c0_97, %c3169] : memref<3x4356xf32, #tpu.memory_space<vmem>>, vector<3x64xf32>
    tpu.vector_store %arg6[%c0_97, %c3169], %96 {strides = array<i32>} : memref<3x4356xf32, #tpu.memory_space<vmem>>, vector<3x64xf32>,
    %c0_98 = arith.constant 0 : index
    %c3072 = arith.constant 3072 : index
    %98 = vector.load %arg3[%c0_98, %c3072] : memref<3x4096xf32, #tpu.memory_space<vmem>>, vector<3x64xf32>
    %c0_99 = arith.constant 0 : index
    %c3235 = arith.constant 3235 : index
    %99 = vector.load %arg6[%c0_99, %c3235] : memref<3x4356xf32, #tpu.memory_space<vmem>>, vector<3x64xf32>
    tpu.vector_store %arg6[%c0_99, %c3235], %98 {strides = array<i32>} : memref<3x4356xf32, #tpu.memory_space<vmem>>, vector<3x64xf32>,
    %c0_100 = arith.constant 0 : index
    %c3136 = arith.constant 3136 : index
    %100 = vector.load %arg3[%c0_100, %c3136] : memref<3x4096xf32, #tpu.memory_space<vmem>>, vector<3x64xf32>
    %c0_101 = arith.constant 0 : index
    %c3301 = arith.constant 3301 : index
    %101 = vector.load %arg6[%c0_101, %c3301] : memref<3x4356xf32, #tpu.memory_space<vmem>>, vector<3x64xf32>
    tpu.vector_store %arg6[%c0_101, %c3301], %100 {strides = array<i32>} : memref<3x4356xf32, #tpu.memory_space<vmem>>, vector<3x64xf32>,
    %c0_102 = arith.constant 0 : index
    %c3200 = arith.constant 3200 : index
    %102 = vector.load %arg3[%c0_102, %c3200] : memref<3x4096xf32, #tpu.memory_space<vmem>>, vector<3x64xf32>
    %c0_103 = arith.constant 0 : index
    %c3367 = arith.constant 3367 : index
    %103 = vector.load %arg6[%c0_103, %c3367] : memref<3x4356xf32, #tpu.memory_space<vmem>>, vector<3x64xf32>
    tpu.vector_store %arg6[%c0_103, %c3367], %102 {strides = array<i32>} : memref<3x4356xf32, #tpu.memory_space<vmem>>, vector<3x64xf32>,
    %c0_104 = arith.constant 0 : index
    %c3264 = arith.constant 3264 : index
    %104 = vector.load %arg3[%c0_104, %c3264] : memref<3x4096xf32, #tpu.memory_space<vmem>>, vector<3x64xf32>
    %c0_105 = arith.constant 0 : index
    %c3433 = arith.constant 3433 : index
    %105 = vector.load %arg6[%c0_105, %c3433] : memref<3x4356xf32, #tpu.memory_space<vmem>>, vector<3x64xf32>
    tpu.vector_store %arg6[%c0_105, %c3433], %104 {strides = array<i32>} : memref<3x4356xf32, #tpu.memory_space<vmem>>, vector<3x64xf32>,
    %c0_106 = arith.constant 0 : index
    %c3328 = arith.constant 3328 : index
    %106 = vector.load %arg3[%c0_106, %c3328] : memref<3x4096xf32, #tpu.memory_space<vmem>>, vector<3x64xf32>
    %c0_107 = arith.constant 0 : index
    %c3499 = arith.constant 3499 : index
    %107 = vector.load %arg6[%c0_107, %c3499] : memref<3x4356xf32, #tpu.memory_space<vmem>>, vector<3x64xf32>
    tpu.vector_store %arg6[%c0_107, %c3499], %106 {strides = array<i32>} : memref<3x4356xf32, #tpu.memory_space<vmem>>, vector<3x64xf32>,
    %c0_108 = arith.constant 0 : index
    %c3392 = arith.constant 3392 : index
    %108 = vector.load %arg3[%c0_108, %c3392] : memref<3x4096xf32, #tpu.memory_space<vmem>>, vector<3x64xf32>
    %c0_109 = arith.constant 0 : index
    %c3565 = arith.constant 3565 : index
    %109 = vector.load %arg6[%c0_109, %c3565] : memref<3x4356xf32, #tpu.memory_space<vmem>>, vector<3x64xf32>
    tpu.vector_store %arg6[%c0_109, %c3565], %108 {strides = array<i32>} : memref<3x4356xf32, #tpu.memory_space<vmem>>, vector<3x64xf32>,
    %c0_110 = arith.constant 0 : index
    %c3456 = arith.constant 3456 : index
    %110 = vector.load %arg3[%c0_110, %c3456] : memref<3x4096xf32, #tpu.memory_space<vmem>>, vector<3x64xf32>
    %c0_111 = arith.constant 0 : index
    %c3631 = arith.constant 3631 : index
    %111 = vector.load %arg6[%c0_111, %c3631] : memref<3x4356xf32, #tpu.memory_space<vmem>>, vector<3x64xf32>
    tpu.vector_store %arg6[%c0_111, %c3631], %110 {strides = array<i32>} : memref<3x4356xf32, #tpu.memory_space<vmem>>, vector<3x64xf32>,
    %c0_112 = arith.constant 0 : index
    %c3520 = arith.constant 3520 : index
    %112 = vector.load %arg3[%c0_112, %c3520] : memref<3x4096xf32, #tpu.memory_space<vmem>>, vector<3x64xf32>
    %c0_113 = arith.constant 0 : index
    %c3697 = arith.constant 3697 : index
    %113 = vector.load %arg6[%c0_113, %c3697] : memref<3x4356xf32, #tpu.memory_space<vmem>>, vector<3x64xf32>
    tpu.vector_store %arg6[%c0_113, %c3697], %112 {strides = array<i32>} : memref<3x4356xf32, #tpu.memory_space<vmem>>, vector<3x64xf32>,
    %c0_114 = arith.constant 0 : index
    %c3584 = arith.constant 3584 : index
    %114 = vector.load %arg3[%c0_114, %c3584] : memref<3x4096xf32, #tpu.memory_space<vmem>>, vector<3x64xf32>
    %c0_115 = arith.constant 0 : index
    %c3763 = arith.constant 3763 : index
    %115 = vector.load %arg6[%c0_115, %c3763] : memref<3x4356xf32, #tpu.memory_space<vmem>>, vector<3x64xf32>
    tpu.vector_store %arg6[%c0_115, %c3763], %114 {strides = array<i32>} : memref<3x4356xf32, #tpu.memory_space<vmem>>, vector<3x64xf32>,
    %c0_116 = arith.constant 0 : index
    %c3648 = arith.constant 3648 : index
    %116 = vector.load %arg3[%c0_116, %c3648] : memref<3x4096xf32, #tpu.memory_space<vmem>>, vector<3x64xf32>
    %c0_117 = arith.constant 0 : index
    %c3829 = arith.constant 3829 : index
    %117 = vector.load %arg6[%c0_117, %c3829] : memref<3x4356xf32, #tpu.memory_space<vmem>>, vector<3x64xf32>
    tpu.vector_store %arg6[%c0_117, %c3829], %116 {strides = array<i32>} : memref<3x4356xf32, #tpu.memory_space<vmem>>, vector<3x64xf32>,
    %c0_118 = arith.constant 0 : index
    %c3712 = arith.constant 3712 : index
    %118 = vector.load %arg3[%c0_118, %c3712] : memref<3x4096xf32, #tpu.memory_space<vmem>>, vector<3x64xf32>
    %c0_119 = arith.constant 0 : index
    %c3895 = arith.constant 3895 : index
    %119 = vector.load %arg6[%c0_119, %c3895] : memref<3x4356xf32, #tpu.memory_space<vmem>>, vector<3x64xf32>
    tpu.vector_store %arg6[%c0_119, %c3895], %118 {strides = array<i32>} : memref<3x4356xf32, #tpu.memory_space<vmem>>, vector<3x64xf32>,
    %c0_120 = arith.constant 0 : index
    %c3776 = arith.constant 3776 : index
    %120 = vector.load %arg3[%c0_120, %c3776] : memref<3x4096xf32, #tpu.memory_space<vmem>>, vector<3x64xf32>
    %c0_121 = arith.constant 0 : index
    %c3961 = arith.constant 3961 : index
    %121 = vector.load %arg6[%c0_121, %c3961] : memref<3x4356xf32, #tpu.memory_space<vmem>>, vector<3x64xf32>
    tpu.vector_store %arg6[%c0_121, %c3961], %120 {strides = array<i32>} : memref<3x4356xf32, #tpu.memory_space<vmem>>, vector<3x64xf32>,
    %c0_122 = arith.constant 0 : index
    %c3840 = arith.constant 3840 : index
    %122 = vector.load %arg3[%c0_122, %c3840] : memref<3x4096xf32, #tpu.memory_space<vmem>>, vector<3x64xf32>
    %c0_123 = arith.constant 0 : index
    %c4027 = arith.constant 4027 : index
    %123 = vector.load %arg6[%c0_123, %c4027] : memref<3x4356xf32, #tpu.memory_space<vmem>>, vector<3x64xf32>
    tpu.vector_store %arg6[%c0_123, %c4027], %122 {strides = array<i32>} : memref<3x4356xf32, #tpu.memory_space<vmem>>, vector<3x64xf32>,
    %c0_124 = arith.constant 0 : index
    %c3904 = arith.constant 3904 : index
    %124 = vector.load %arg3[%c0_124, %c3904] : memref<3x4096xf32, #tpu.memory_space<vmem>>, vector<3x64xf32>
    %c0_125 = arith.constant 0 : index
    %c4093 = arith.constant 4093 : index
    %125 = vector.load %arg6[%c0_125, %c4093] : memref<3x4356xf32, #tpu.memory_space<vmem>>, vector<3x64xf32>
    tpu.vector_store %arg6[%c0_125, %c4093], %124 {strides = array<i32>} : memref<3x4356xf32, #tpu.memory_space<vmem>>, vector<3x64xf32>,
    %c0_126 = arith.constant 0 : index
    %c3968 = arith.constant 3968 : index
    %126 = vector.load %arg3[%c0_126, %c3968] : memref<3x4096xf32, #tpu.memory_space<vmem>>, vector<3x64xf32>
    %c0_127 = arith.constant 0 : index
    %c4159 = arith.constant 4159 : index
    %127 = vector.load %arg6[%c0_127, %c4159] : memref<3x4356xf32, #tpu.memory_space<vmem>>, vector<3x64xf32>
    tpu.vector_store %arg6[%c0_127, %c4159], %126 {strides = array<i32>} : memref<3x4356xf32, #tpu.memory_space<vmem>>, vector<3x64xf32>,
    %c0_128 = arith.constant 0 : index
    %c4032 = arith.constant 4032 : index
    %128 = vector.load %arg3[%c0_128, %c4032] : memref<3x4096xf32, #tpu.memory_space<vmem>>, vector<3x64xf32>
    %c0_129 = arith.constant 0 : index
    %c4225 = arith.constant 4225 : index
    %129 = vector.load %arg6[%c0_129, %c4225] : memref<3x4356xf32, #tpu.memory_space<vmem>>, vector<3x64xf32>
    tpu.vector_store %arg6[%c0_129, %c4225], %128 {strides = array<i32>} : memref<3x4356xf32, #tpu.memory_space<vmem>>, vector<3x64xf32>,
    %c0_130 = arith.constant 0 : index
    %c0_131 = arith.constant 0 : index
    %130 = vector.load %arg2[%c0_130, %c0_131] : memref<8x1xf32, #tpu.memory_space<vmem>>, vector<8x1xf32>
    %c0_132 = arith.constant 0 : index
    %c0_133 = arith.constant 0 : index
    %131 = vector.load %arg1[%c0_132, %c0_133] : memref<8x3xf32, #tpu.memory_space<vmem>>, vector<8x1xf32>
    %c0_134 = arith.constant 0 : index
    %c0_135 = arith.constant 0 : index
    %132 = vector.load %arg6[%c0_134, %c0_135] : memref<3x4356xf32, #tpu.memory_space<vmem>>, vector<1x4356xf32>
    %133 = vector.broadcast %131 : vector<8x1xf32> to vector<8x4356xf32>
    %134 = vector.broadcast %132 : vector<1x4356xf32> to vector<8x4356xf32>
    %135 = arith.mulf %133, %134 : vector<8x4356xf32>
    %136 = vector.broadcast %130 : vector<8x1xf32> to vector<8x4356xf32>
    %137 = arith.addf %136, %135 : vector<8x4356xf32>
    %c0_136 = arith.constant 0 : index
    %c1 = arith.constant 1 : index
    %138 = vector.load %arg1[%c0_136, %c1] : memref<8x3xf32, #tpu.memory_space<vmem>>, vector<8x1xf32>
    %c1_137 = arith.constant 1 : index
    %c0_138 = arith.constant 0 : index
    %139 = vector.load %arg6[%c1_137, %c0_138] : memref<3x4356xf32, #tpu.memory_space<vmem>>, vector<1x4356xf32>
    %140 = vector.broadcast %138 : vector<8x1xf32> to vector<8x4356xf32>
    %141 = vector.broadcast %139 : vector<1x4356xf32> to vector<8x4356xf32>
    %142 = arith.mulf %140, %141 : vector<8x4356xf32>
    %143 = arith.addf %137, %142 : vector<8x4356xf32>
    %c0_139 = arith.constant 0 : index
    %c2 = arith.constant 2 : index
    %144 = vector.load %arg1[%c0_139, %c2] : memref<8x3xf32, #tpu.memory_space<vmem>>, vector<8x1xf32>
    %c2_140 = arith.constant 2 : index
    %c0_141 = arith.constant 0 : index
    %145 = vector.load %arg6[%c2_140, %c0_141] : memref<3x4356xf32, #tpu.memory_space<vmem>>, vector<1x4356xf32>
    %146 = vector.broadcast %144 : vector<8x1xf32> to vector<8x4356xf32>
    %147 = vector.broadcast %145 : vector<1x4356xf32> to vector<8x4356xf32>
    %148 = arith.mulf %146, %147 : vector<8x4356xf32>
    %149 = arith.addf %143, %148 : vector<8x4356xf32>
    %c0_142 = arith.constant 0 : index
    %c0_143 = arith.constant 0 : index
    %150 = memref.load %arg0[%c0_142, %c0_143] : memref<1x1xi32, #tpu.memory_space<smem>>
    %151 = arith.sitofp %150 : i32 to f32
    %c0_144 = arith.constant 0 : index
    %c0_145 = arith.constant 0 : index
    %152 = vector.load %arg5[%c0_144, %c0_145] : memref<8x4356xf32, #tpu.memory_space<vmem>>, vector<8x4356xf32>
    tpu.vector_store %arg5[%c0_144, %c0_145], %149 {strides = array<i32>} : memref<8x4356xf32, #tpu.memory_space<vmem>>, vector<8x4356xf32>,
    %153 = vector.broadcast %151 : f32 to vector<8x4356xf32>
    %154 = arith.addf %149, %153 : vector<8x4356xf32>
    %c0_146 = arith.constant 0 : index
    %c0_147 = arith.constant 0 : index
    %155 = vector.load %arg4[%c0_146, %c0_147] : memref<8x4356xf32, #tpu.memory_space<vmem>>, vector<8x4356xf32>
    tpu.vector_store %arg4[%c0_146, %c0_147], %154 {strides = array<i32>} : memref<8x4356xf32, #tpu.memory_space<vmem>>, vector<8x4356xf32>,
    return
  }
}

</mosaic_0001>

<llo_original>
// kernel: model_forward.1
$region0: #{model_forward.1}
  #allocation0 [shape = 'u32[]', space=smem, size = 0x4, offset = 0x4, fixed_abs, tag = 'smem constant byte address 0x4 - core index']
  #allocation1 [shape = 'u32[144,128]{1,0:T(1,128)}', space=vmem, size = 0x12000, scoped, tag = 'internal scratch']
  #allocation2 [shape = 'f32[3,4356]{1,0:T(4,128)}', space=vmem, size = 0x11800, scoped, tag = 'scratch operand']
  #allocation3 [shape = 's32[1,1]{1,0:T(1,128)S(6)}', space=smem, size = 0x200, scoped, tag = 'scoped memory for model_forward.1']
  %s0 = inlined_call_operand.<no memory space> [shape: s32[1,1], index: 0, kind: input, shape index: {}]
  %s1 = inlined_call_operand.vmem [shape: f32[8,3], index: 1, kind: input, shape index: {}]
  %s2 = inlined_call_operand.vmem [shape: f32[8,1], index: 2, kind: input, shape index: {}]
  %s3 = inlined_call_operand.vmem [shape: f32[3,4096], index: 3, kind: input, shape index: {}]
  %s4 = inlined_call_operand.vmem [shape: f32[8,4356], index: 4, kind: output, shape index: {0}]
  %s5 = inlined_call_operand.vmem [shape: f32[8,4356], index: 5, kind: output, shape index: {1}]
  %6 = xla_tuple %s4, %s5
  %s7 = sld [smem:[#allocation0]]
  $region34: #{model_forward.1} parent=0
    _
  %s9 = ssub.s32 1, %s7
  %s10 = scalar_select 0, %s9, %s7
  %11 = sst [smem:[#allocation3]] %s0
  // Predicated region
  $region2: #{model_forward.1} parent=0 // pred_check
    _
  $region3: #{model_forward.1} parent=0 // pred_check_branch
    %13 = sbr.rel (0) target = $region5
  $region4: #{model_forward.1} parent=0 // pred_region
    _
  $region5: #{model_forward.1} parent=0 // pred_fallthru
    _
  // Predicated region
  $region6: #{model_forward.1} parent=0 // pred_check
    _
  $region7: #{model_forward.1} parent=0 // pred_check_branch
    %15 = sbr.rel (0) target = $region9
  $region8: #{model_forward.1} parent=0 // pred_region
    _
  $region9: #{model_forward.1} parent=0 // pred_fallthru
    _
  // Predicated region
  $region10: #{model_forward.1} parent=0 // pred_check
    _
  $region11: #{model_forward.1} parent=0 // pred_check_branch
    %17 = sbr.rel (0) target = $region13
  $region12: #{model_forward.1} parent=0 // pred_region
    _
  $region13: #{model_forward.1} parent=0 // pred_fallthru
    _
  // Predicated region
  $region14: #{model_forward.1} parent=0 // pred_check
    _
  $region15: #{model_forward.1} parent=0 // pred_check_branch
    %19 = sbr.rel (0) target = $region17
  $region16: #{model_forward.1} parent=0 // pred_region
    _
  $region17: #{model_forward.1} parent=0 // pred_fallthru
    _
  %20 = vst [vmem:[#allocation2] sm:$0x77] 0.0
  %21 = vst [vmem:[#allocation2 + $0x8] sm:$0x77] 0.0
  %22 = vst [vmem:[#allocation2 + $0x10] sm:$0x77] 0.0
  %23 = vst [vmem:[#allocation2 + $0x18] sm:$0x77] 0.0
  %24 = vst [vmem:[#allocation2 + $0x20] sm:$0x77] 0.0
  %25 = vst [vmem:[#allocation2 + $0x28] sm:$0x77] 0.0
  %26 = vst [vmem:[#allocation2 + $0x30] sm:$0x77] 0.0
  %27 = vst [vmem:[#allocation2 + $0x38] sm:$0x77] 0.0
  %28 = vst [vmem:[#allocation2 + $0x40] sm:$0x77] 0.0
  %29 = vst [vmem:[#allocation2 + $0x48] sm:$0x77] 0.0
  %30 = vst [vmem:[#allocation2 + $0x50] sm:$0x77] 0.0
  %31 = vst [vmem:[#allocation2 + $0x58] sm:$0x77] 0.0
  %32 = vst [vmem:[#allocation2 + $0x60] sm:$0x77] 0.0
  %33 = vst [vmem:[#allocation2 + $0x68] sm:$0x77] 0.0
  %34 = vst [vmem:[#allocation2 + $0x70] sm:$0x77] 0.0
  %35 = vst [vmem:[#allocation2 + $0x78] sm:$0x77] 0.0
  %36 = vst [vmem:[#allocation2 + $0x80] sm:$0x77] 0.0
  %vm37 = vcmask 26624
  %38 = vst.msk [vmem:[#allocation2 + $0x88] sm:$0x7] %vm37, 0.0
  %v39 = vld [vmem:[%s3] sm:$0x7]
  %41 = vrot.lane.b32.xlu0 %v39, 67
  %v42 = vpop.permute.xlu0 %41
  %v43 = vrot.slane %v42, 4
  %vm44 = vcmask 547840
  %v45 = vsel %vm44, %v43, %v42
  %vm47 = vcmask 1042968
  %vm48 = vcmask 22532
  %vm49 = vmor %vm48, %vm47
  %50 = vst.msk [vmem:[#allocation2] sm:$0x77] %vm49, %v45
  %v51 = vld [vmem:[%s3] sm:$0x7]
  %53 = vrot.lane.b32.xlu0 %v51, 69
  %v54 = vpop.permute.xlu0 %53
  %vm56 = vcmask 559144
  %57 = vst.msk [vmem:[#allocation2 + $0x4] sm:$0x7] %vm56, %v54
  %v58 = vld [vmem:[%s3 + $0x4] sm:$0x7]
  %60 = vrot.lane.b32.xlu0 %v58, 71
  %v61 = vpop.permute.xlu0 %60
  %v62 = vrot.slane %v61, 4
  %vm63 = vcmask 580608
  %v64 = vsel %vm63, %v62, %v61
  %vm66 = vcmask 1043000
  %vm67 = vcmask 55300
  %vm68 = vmor %vm67, %vm66
  %69 = vst.msk [vmem:[#allocation2 + $0x4] sm:$0x77] %vm68, %v64
  %v70 = vld [vmem:[%s3 + $0x4] sm:$0x7]
  %72 = vrot.lane.b32.xlu0 %v70, 73
  %v73 = vpop.permute.xlu0 %72
  %vm75 = vcmask 591944
  %76 = vst.msk [vmem:[#allocation2 + $0x8] sm:$0x7] %vm75, %v73
  %v77 = vld [vmem:[%s3 + $0x8] sm:$0x7]
  %79 = vrot.lane.b32.xlu0 %v77, 75
  %v80 = vpop.permute.xlu0 %79
  %v81 = vrot.slane %v80, 4
  %vm82 = vcmask 613376
  %v83 = vsel %vm82, %v81, %v80
  %vm85 = vcmask 1043032
  %vm86 = vcmask 88068
  %vm87 = vmor %vm86, %vm85
  %88 = vst.msk [vmem:[#allocation2 + $0x8] sm:$0x77] %vm87, %v83
  %v89 = vld [vmem:[%s3 + $0x8] sm:$0x7]
  %91 = vrot.lane.b32.xlu0 %v89, 77
  %v92 = vpop.permute.xlu0 %91
  %vm94 = vcmask 624744
  %95 = vst.msk [vmem:[#allocation2 + $0xc] sm:$0x7] %vm94, %v92
  %v96 = vld [vmem:[%s3 + $0xc] sm:$0x7]
  %98 = vrot.lane.b32.xlu0 %v96, 79
  %v99 = vpop.permute.xlu0 %98
  %v100 = vrot.slane %v99, 4
  %vm101 = vcmask 646144
  %v102 = vsel %vm101, %v100, %v99
  %vm104 = vcmask 1043064
  %vm105 = vcmask 120836
  %vm106 = vmor %vm105, %vm104
  %107 = vst.msk [vmem:[#allocation2 + $0xc] sm:$0x77] %vm106, %v102
  %v108 = vld [vmem:[%s3 + $0xc] sm:$0x7]
  %110 = vrot.lane.b32.xlu0 %v108, 81
  %v111 = vpop.permute.xlu0 %110
  %vm113 = vcmask 657544
  %114 = vst.msk [vmem:[#allocation2 + $0x10] sm:$0x7] %vm113, %v111
  %v115 = vld [vmem:[%s3 + $0x10] sm:$0x7]
  %117 = vrot.lane.b32.xlu0 %v115, 83
  %v118 = vpop.permute.xlu0 %117
  %v119 = vrot.slane %v118, 4
  %vm120 = vcmask 678912
  %v121 = vsel %vm120, %v119, %v118
  %vm123 = vcmask 1043096
  %vm124 = vcmask 153604
  %vm125 = vmor %vm124, %vm123
  %126 = vst.msk [vmem:[#allocation2 + $0x10] sm:$0x77] %vm125, %v121
  %v127 = vld [vmem:[%s3 + $0x10] sm:$0x7]
  %129 = vrot.lane.b32.xlu0 %v127, 85
  %v130 = vpop.permute.xlu0 %129
  %vm132 = vcmask 690344
  %133 = vst.msk [vmem:[#allocation2 + $0x14] sm:$0x7] %vm132, %v130
  %v134 = vld [vmem:[%s3 + $0x14] sm:$0x7]
  %136 = vrot.lane.b32.xlu0 %v134, 87
  %v137 = vpop.permute.xlu0 %136
  %v138 = vrot.slane %v137, 4
  %vm139 = vcmask 711680
  %v140 = vsel %vm139, %v138, %v137
  %vm142 = vcmask 1043128
  %vm143 = vcmask 186372
  %vm144 = vmor %vm143, %vm142
  %145 = vst.msk [vmem:[#allocation2 + $0x14] sm:$0x77] %vm144, %v140
  %v146 = vld [vmem:[%s3 + $0x14] sm:$0x7]
  %148 = vrot.lane.b32.xlu0 %v146, 89
  %v149 = vpop.permute.xlu0 %148
  %vm151 = vcmask 723144
  %152 = vst.msk [vmem:[#allocation2 + $0x18] sm:$0x7] %vm151, %v149
  %v153 = vld [vmem:[%s3 + $0x18] sm:$0x7]
  %155 = vrot.lane.b32.xlu0 %v153, 91
  %v156 = vpop.permute.xlu0 %155
  %v157 = vrot.slane %v156, 4
  %vm158 = vcmask 744448
  %v159 = vsel %vm158, %v157, %v156
  %vm161 = vcmask 1043160
  %vm162 = vcmask 219140
  %vm163 = vmor %vm162, %vm161
  %164 = vst.msk [vmem:[#allocation2 + $0x18] sm:$0x77] %vm163, %v159
  %v165 = vld [vmem:[%s3 + $0x18] sm:$0x7]
  %167 = vrot.lane.b32.xlu0 %v165, 93
  %v168 = vpop.permute.xlu0 %167
  %vm170 = vcmask 755944
  %171 = vst.msk [vmem:[#allocation2 + $0x1c] sm:$0x7] %vm170, %v168
  %v172 = vld [vmem:[%s3 + $0x1c] sm:$0x7]
  %174 = vrot.lane.b32.xlu0 %v172, 95
  %v175 = vpop.permute.xlu0 %174
  %v176 = vrot.slane %v175, 4
  %vm177 = vcmask 777216
  %v178 = vsel %vm177, %v176, %v175
  %vm180 = vcmask 1043192
  %vm181 = vcmask 251908
  %vm182 = vmor %vm181, %vm180
  %183 = vst.msk [vmem:[#allocation2 + $0x1c] sm:$0x77] %vm182, %v178
  %v184 = vld [vmem:[%s3 + $0x1c] sm:$0x7]
  %186 = vrot.lane.b32.xlu0 %v184, 97
  %v187 = vpop.permute.xlu0 %186
  %vm189 = vcmask 788744
  %190 = vst.msk [vmem:[#allocation2 + $0x20] sm:$0x7] %vm189, %v187
  %v191 = vld [vmem:[%s3 + $0x20] sm:$0x7]
  %193 = vrot.lane.b32.xlu0 %v191, 99
  %v194 = vpop.permute.xlu0 %193
  %v195 = vrot.slane %v194, 4
  %vm196 = vcmask 809984
  %v197 = vsel %vm196, %v195, %v194
  %vm199 = vcmask 1043224
  %vm200 = vcmask 284676
  %vm201 = vmor %vm200, %vm199
  %202 = vst.msk [vmem:[#allocation2 + $0x20] sm:$0x77] %vm201, %v197
  %v203 = vld [vmem:[%s3 + $0x20] sm:$0x7]
  %205 = vrot.lane.b32.xlu0 %v203, 101
  %v206 = vpop.permute.xlu0 %205
  %vm208 = vcmask 821544
  %209 = vst.msk [vmem:[#allocation2 + $0x24] sm:$0x7] %vm208, %v206
  %v210 = vld [vmem:[%s3 + $0x24] sm:$0x7]
  %212 = vrot.lane.b32.xlu0 %v210, 103
  %v213 = vpop.permute.xlu0 %212
  %v214 = vrot.slane %v213, 4
  %vm215 = vcmask 842752
  %v216 = vsel %vm215, %v214, %v213
  %vm218 = vcmask 1043256
  %vm219 = vcmask 317444
  %vm220 = vmor %vm219, %vm218
  %221 = vst.msk [vmem:[#allocation2 + $0x24] sm:$0x77] %vm220, %v216
  %v222 = vld [vmem:[%s3 + $0x24] sm:$0x7]
  %224 = vrot.lane.b32.xlu0 %v222, 105
  %v225 = vpop.permute.xlu0 %224
  %vm227 = vcmask 854344
  %228 = vst.msk [vmem:[#allocation2 + $0x28] sm:$0x7] %vm227, %v225
  %v229 = vld [vmem:[%s3 + $0x28] sm:$0x7]
  %231 = vrot.lane.b32.xlu0 %v229, 107
  %v232 = vpop.permute.xlu0 %231
  %v233 = vrot.slane %v232, 4
  %vm234 = vcmask 875520
  %v235 = vsel %vm234, %v233, %v232
  %vm237 = vcmask 1043288
  %vm238 = vcmask 350212
  %vm239 = vmor %vm238, %vm237
  %240 = vst.msk [vmem:[#allocation2 + $0x28] sm:$0x77] %vm239, %v235
  %v241 = vld [vmem:[%s3 + $0x28] sm:$0x7]
  %243 = vrot.lane.b32.xlu0 %v241, 109
  %v244 = vpop.permute.xlu0 %243
  %vm246 = vcmask 887144
  %247 = vst.msk [vmem:[#allocation2 + $0x2c] sm:$0x7] %vm246, %v244
  %v248 = vld [vmem:[%s3 + $0x2c] sm:$0x7]
  %250 = vrot.lane.b32.xlu0 %v248, 111
  %v251 = vpop.permute.xlu0 %250
  %v252 = vrot.slane %v251, 4
  %vm253 = vcmask 908288
  %v254 = vsel %vm253, %v252, %v251
  %vm256 = vcmask 1043320
  %vm257 = vcmask 382980
  %vm258 = vmor %vm257, %vm256
  %259 = vst.msk [vmem:[#allocation2 + $0x2c] sm:$0x77] %vm258, %v254
  %v260 = vld [vmem:[%s3 + $0x2c] sm:$0x7]
  %262 = vrot.lane.b32.xlu0 %v260, 113
  %v263 = vpop.permute.xlu0 %262
  %vm265 = vcmask 919944
  %266 = vst.msk [vmem:[#allocation2 + $0x30] sm:$0x7] %vm265, %v263
  %v267 = vld [vmem:[%s3 + $0x30] sm:$0x7]
  %269 = vrot.lane.b32.xlu0 %v267, 115
  %v270 = vpop.permute.xlu0 %269
  %v271 = vrot.slane %v270, 4
  %vm272 = vcmask 941056
  %v273 = vsel %vm272, %v271, %v270
  %vm275 = vcmask 1043352
  %vm276 = vcmask 415748
  %vm277 = vmor %vm276, %vm275
  %278 = vst.msk [vmem:[#allocation2 + $0x30] sm:$0x77] %vm277, %v273
  %v279 = vld [vmem:[%s3 + $0x30] sm:$0x7]
  %281 = vrot.lane.b32.xlu0 %v279, 117
  %v282 = vpop.permute.xlu0 %281
  %vm284 = vcmask 952744
  %285 = vst.msk [vmem:[#allocation2 + $0x34] sm:$0x7] %vm284, %v282
  %v286 = vld [vmem:[%s3 + $0x34] sm:$0x7]
  %288 = vrot.lane.b32.xlu0 %v286, 119
  %v289 = vpop.permute.xlu0 %288
  %v290 = vrot.slane %v289, 4
  %vm291 = vcmask 973824
  %v292 = vsel %vm291, %v290, %v289
  %vm294 = vcmask 1043384
  %vm295 = vcmask 448516
  %vm296 = vmor %vm295, %vm294
  %297 = vst.msk [vmem:[#allocation2 + $0x34] sm:$0x77] %vm296, %v292
  %v298 = vld [vmem:[%s3 + $0x34] sm:$0x7]
  %300 = vrot.lane.b32.xlu0 %v298, 121
  %v301 = vpop.permute.xlu0 %300
  %vm303 = vcmask 985544
  %304 = vst.msk [vmem:[#allocation2 + $0x38] sm:$0x7] %vm303, %v301
  %v305 = vld [vmem:[%s3 + $0x38] sm:$0x7]
  %307 = vrot.lane.b32.xlu0 %v305, 123
  %v308 = vpop.permute.xlu0 %307
  %v309 = vrot.slane %v308, 4
  %vm310 = vcmask 1006592
  %v311 = vsel %vm310, %v309, %v308
  %vm313 = vcmask 1043416
  %vm314 = vcmask 481284
  %vm315 = vmor %vm314, %vm313
  %316 = vst.msk [vmem:[#allocation2 + $0x38] sm:$0x77] %vm315, %v311
  %v317 = vld [vmem:[%s3 + $0x38] sm:$0x7]
  %319 = vrot.lane.b32.xlu0 %v317, 125
  %v320 = vpop.permute.xlu0 %319
  %vm322 = vcmask 1018344
  %323 = vst.msk [vmem:[#allocation2 + $0x3c] sm:$0x7] %vm322, %v320
  %v324 = vld [vmem:[%s3 + $0x3c] sm:$0x7]
  %326 = vrot.lane.b32.xlu0 %v324, 127
  %v327 = vpop.permute.xlu0 %326
  %v328 = vrot.slane %v327, 4
  %vm329 = vcmask 1039360
  %v330 = vsel %vm329, %v328, %v327
  %vm332 = vcmask 1043448
  %vm333 = vcmask 514052
  %vm334 = vmor %vm333, %vm332
  %335 = vst.msk [vmem:[#allocation2 + $0x3c] sm:$0x77] %vm334, %v330
  %v336 = vld [vmem:[%s3 + $0x3c] sm:$0x7]
  %338 = vrot.lane.b32.xlu0 %v336, 1
  %v339 = vpop.permute.xlu0 %338
  %v340 = vrot.slane %v339, 4
  %vm341 = vcmask 7168
  %v342 = vsel %vm341, %v340, %v339
  %vm344 = vcmask 1042952
  %vm345 = vcmask 6148
  %vm346 = vmor %vm345, %vm344
  %347 = vst.msk [vmem:[#allocation2 + $0x40] sm:$0x77] %vm346, %v342
  %v348 = vld [vmem:[%s3 + $0x40] sm:$0x7]
  %350 = vrot.lane.b32.xlu0 %v348, 3
  %v351 = vpop.permute.xlu0 %350
  %vm353 = vcmask 542744
  %354 = vst.msk [vmem:[#allocation2 + $0x44] sm:$0x7] %vm353, %v351
  %v355 = vld [vmem:[%s3 + $0x40] sm:$0x7]
  %357 = vrot.lane.b32.xlu0 %v355, 5
  %v358 = vpop.permute.xlu0 %357
  %v359 = vrot.slane %v358, 4
  %vm360 = vcmask 39936
  %v361 = vsel %vm360, %v359, %v358
  %vm363 = vcmask 1042984
  %vm364 = vcmask 38916
  %vm365 = vmor %vm364, %vm363
  %366 = vst.msk [vmem:[#allocation2 + $0x44] sm:$0x77] %vm365, %v361
  %v367 = vld [vmem:[%s3 + $0x44] sm:$0x7]
  %369 = vrot.lane.b32.xlu0 %v367, 7
  %v370 = vpop.permute.xlu0 %369
  %vm372 = vcmask 575544
  %373 = vst.msk [vmem:[#allocation2 + $0x48] sm:$0x7] %vm372, %v370
  %v374 = vld [vmem:[%s3 + $0x44] sm:$0x7]
  %376 = vrot.lane.b32.xlu0 %v374, 9
  %v377 = vpop.permute.xlu0 %376
  %v378 = vrot.slane %v377, 4
  %vm379 = vcmask 72704
  %v380 = vsel %vm379, %v378, %v377
  %vm382 = vcmask 1043016
  %vm383 = vcmask 71684
  %vm384 = vmor %vm383, %vm382
  %385 = vst.msk [vmem:[#allocation2 + $0x48] sm:$0x77] %vm384, %v380
  %v386 = vld [vmem:[%s3 + $0x48] sm:$0x7]
  %388 = vrot.lane.b32.xlu0 %v386, 11
  %v389 = vpop.permute.xlu0 %388
  %vm391 = vcmask 608344
  %392 = vst.msk [vmem:[#allocation2 + $0x4c] sm:$0x7] %vm391, %v389
  %v393 = vld [vmem:[%s3 + $0x48] sm:$0x7]
  %395 = vrot.lane.b32.xlu0 %v393, 13
  %v396 = vpop.permute.xlu0 %395
  %v397 = vrot.slane %v396, 4
  %vm398 = vcmask 105472
  %v399 = vsel %vm398, %v397, %v396
  %vm401 = vcmask 1043048
  %vm402 = vcmask 104452
  %vm403 = vmor %vm402, %vm401
  %404 = vst.msk [vmem:[#allocation2 + $0x4c] sm:$0x77] %vm403, %v399
  %v405 = vld [vmem:[%s3 + $0x4c] sm:$0x7]
  %407 = vrot.lane.b32.xlu0 %v405, 15
  %v408 = vpop.permute.xlu0 %407
  %vm410 = vcmask 641144
  %411 = vst.msk [vmem:[#allocation2 + $0x50] sm:$0x7] %vm410, %v408
  %v412 = vld [vmem:[%s3 + $0x4c] sm:$0x7]
  %414 = vrot.lane.b32.xlu0 %v412, 17
  %v415 = vpop.permute.xlu0 %414
  %v416 = vrot.slane %v415, 4
  %vm417 = vcmask 138240
  %v418 = vsel %vm417, %v416, %v415
  %vm420 = vcmask 1043080
  %vm421 = vcmask 137220
  %vm422 = vmor %vm421, %vm420
  %423 = vst.msk [vmem:[#allocation2 + $0x50] sm:$0x77] %vm422, %v418
  %v424 = vld [vmem:[%s3 + $0x50] sm:$0x7]
  %426 = vrot.lane.b32.xlu0 %v424, 19
  %v427 = vpop.permute.xlu0 %426
  %vm429 = vcmask 673944
  %430 = vst.msk [vmem:[#allocation2 + $0x54] sm:$0x7] %vm429, %v427
  %v431 = vld [vmem:[%s3 + $0x50] sm:$0x7]
  %433 = vrot.lane.b32.xlu0 %v431, 21
  %v434 = vpop.permute.xlu0 %433
  %v435 = vrot.slane %v434, 4
  %vm436 = vcmask 171008
  %v437 = vsel %vm436, %v435, %v434
  %vm439 = vcmask 1043112
  %vm440 = vcmask 169988
  %vm441 = vmor %vm440, %vm439
  %442 = vst.msk [vmem:[#allocation2 + $0x54] sm:$0x77] %vm441, %v437
  %v443 = vld [vmem:[%s3 + $0x54] sm:$0x7]
  %445 = vrot.lane.b32.xlu0 %v443, 23
  %v446 = vpop.permute.xlu0 %445
  %vm448 = vcmask 706744
  %449 = vst.msk [vmem:[#allocation2 + $0x58] sm:$0x7] %vm448, %v446
  %v450 = vld [vmem:[%s3 + $0x54] sm:$0x7]
  %452 = vrot.lane.b32.xlu0 %v450, 25
  %v453 = vpop.permute.xlu0 %452
  %v454 = vrot.slane %v453, 4
  %vm455 = vcmask 203776
  %v456 = vsel %vm455, %v454, %v453
  %vm458 = vcmask 1043144
  %vm459 = vcmask 202756
  %vm460 = vmor %vm459, %vm458
  %461 = vst.msk [vmem:[#allocation2 + $0x58] sm:$0x77] %vm460, %v456
  %v462 = vld [vmem:[%s3 + $0x58] sm:$0x7]
  %464 = vrot.lane.b32.xlu0 %v462, 27
  %v465 = vpop.permute.xlu0 %464
  %vm467 = vcmask 739544
  %468 = vst.msk [vmem:[#allocation2 + $0x5c] sm:$0x7] %vm467, %v465
  %v469 = vld [vmem:[%s3 + $0x58] sm:$0x7]
  %471 = vrot.lane.b32.xlu0 %v469, 29
  %v472 = vpop.permute.xlu0 %471
  %v473 = vrot.slane %v472, 4
  %vm474 = vcmask 236544
  %v475 = vsel %vm474, %v473, %v472
  %vm477 = vcmask 1043176
  %vm478 = vcmask 235524
  %vm479 = vmor %vm478, %vm477
  %480 = vst.msk [vmem:[#allocation2 + $0x5c] sm:$0x77] %vm479, %v475
  %v481 = vld [vmem:[%s3 + $0x5c] sm:$0x7]
  %483 = vrot.lane.b32.xlu0 %v481, 31
  %v484 = vpop.permute.xlu0 %483
  %vm486 = vcmask 772344
  %487 = vst.msk [vmem:[#allocation2 + $0x60] sm:$0x7] %vm486, %v484
  %v488 = vld [vmem:[%s3 + $0x5c] sm:$0x7]
  %490 = vrot.lane.b32.xlu0 %v488, 33
  %v491 = vpop.permute.xlu0 %490
  %v492 = vrot.slane %v491, 4
  %vm493 = vcmask 269312
  %v494 = vsel %vm493, %v492, %v491
  %vm496 = vcmask 1043208
  %vm497 = vcmask 268292
  %vm498 = vmor %vm497, %vm496
  %499 = vst.msk [vmem:[#allocation2 + $0x60] sm:$0x77] %vm498, %v494
  %v500 = vld [vmem:[%s3 + $0x60] sm:$0x7]
  %502 = vrot.lane.b32.xlu0 %v500, 35
  %v503 = vpop.permute.xlu0 %502
  %vm505 = vcmask 805144
  %506 = vst.msk [vmem:[#allocation2 + $0x64] sm:$0x7] %vm505, %v503
  %v507 = vld [vmem:[%s3 + $0x60] sm:$0x7]
  %509 = vrot.lane.b32.xlu0 %v507, 37
  %v510 = vpop.permute.xlu0 %509
  %v511 = vrot.slane %v510, 4
  %vm512 = vcmask 302080
  %v513 = vsel %vm512, %v511, %v510
  %vm515 = vcmask 1043240
  %vm516 = vcmask 301060
  %vm517 = vmor %vm516, %vm515
  %518 = vst.msk [vmem:[#allocation2 + $0x64] sm:$0x77] %vm517, %v513
  %v519 = vld [vmem:[%s3 + $0x64] sm:$0x7]
  %521 = vrot.lane.b32.xlu0 %v519, 39
  %v522 = vpop.permute.xlu0 %521
  %vm524 = vcmask 837944
  %525 = vst.msk [vmem:[#allocation2 + $0x68] sm:$0x7] %vm524, %v522
  %v526 = vld [vmem:[%s3 + $0x64] sm:$0x7]
  %528 = vrot.lane.b32.xlu0 %v526, 41
  %v529 = vpop.permute.xlu0 %528
  %v530 = vrot.slane %v529, 4
  %vm531 = vcmask 334848
  %v532 = vsel %vm531, %v530, %v529
  %vm534 = vcmask 1043272
  %vm535 = vcmask 333828
  %vm536 = vmor %vm535, %vm534
  %537 = vst.msk [vmem:[#allocation2 + $0x68] sm:$0x77] %vm536, %v532
  %v538 = vld [vmem:[%s3 + $0x68] sm:$0x7]
  %540 = vrot.lane.b32.xlu0 %v538, 43
  %v541 = vpop.permute.xlu0 %540
  %vm543 = vcmask 870744
  %544 = vst.msk [vmem:[#allocation2 + $0x6c] sm:$0x7] %vm543, %v541
  %v545 = vld [vmem:[%s3 + $0x68] sm:$0x7]
  %547 = vrot.lane.b32.xlu0 %v545, 45
  %v548 = vpop.permute.xlu0 %547
  %v549 = vrot.slane %v548, 4
  %vm550 = vcmask 367616
  %v551 = vsel %vm550, %v549, %v548
  %vm553 = vcmask 1043304
  %vm554 = vcmask 366596
  %vm555 = vmor %vm554, %vm553
  %556 = vst.msk [vmem:[#allocation2 + $0x6c] sm:$0x77] %vm555, %v551
  %v557 = vld [vmem:[%s3 + $0x6c] sm:$0x7]
  %559 = vrot.lane.b32.xlu0 %v557, 47
  %v560 = vpop.permute.xlu0 %559
  %vm562 = vcmask 903544
  %563 = vst.msk [vmem:[#allocation2 + $0x70] sm:$0x7] %vm562, %v560
  %v564 = vld [vmem:[%s3 + $0x6c] sm:$0x7]
  %566 = vrot.lane.b32.xlu0 %v564, 49
  %v567 = vpop.permute.xlu0 %566
  %v568 = vrot.slane %v567, 4
  %vm569 = vcmask 400384
  %v570 = vsel %vm569, %v568, %v567
  %vm572 = vcmask 1043336
  %vm573 = vcmask 399364
  %vm574 = vmor %vm573, %vm572
  %575 = vst.msk [vmem:[#allocation2 + $0x70] sm:$0x77] %vm574, %v570
  %v576 = vld [vmem:[%s3 + $0x70] sm:$0x7]
  %578 = vrot.lane.b32.xlu0 %v576, 51
  %v579 = vpop.permute.xlu0 %578
  %vm581 = vcmask 936344
  %582 = vst.msk [vmem:[#allocation2 + $0x74] sm:$0x7] %vm581, %v579
  %v583 = vld [vmem:[%s3 + $0x70] sm:$0x7]
  %585 = vrot.lane.b32.xlu0 %v583, 53
  %v586 = vpop.permute.xlu0 %585
  %v587 = vrot.slane %v586, 4
  %vm588 = vcmask 433152
  %v589 = vsel %vm588, %v587, %v586
  %vm591 = vcmask 1043368
  %vm592 = vcmask 432132
  %vm593 = vmor %vm592, %vm591
  %594 = vst.msk [vmem:[#allocation2 + $0x74] sm:$0x77] %vm593, %v589
  %v595 = vld [vmem:[%s3 + $0x74] sm:$0x7]
  %597 = vrot.lane.b32.xlu0 %v595, 55
  %v598 = vpop.permute.xlu0 %597
  %vm600 = vcmask 969144
  %601 = vst.msk [vmem:[#allocation2 + $0x78] sm:$0x7] %vm600, %v598
  %v602 = vld [vmem:[%s3 + $0x74] sm:$0x7]
  %604 = vrot.lane.b32.xlu0 %v602, 57
  %v605 = vpop.permute.xlu0 %604
  %v606 = vrot.slane %v605, 4
  %vm607 = vcmask 465920
  %v608 = vsel %vm607, %v606, %v605
  %vm610 = vcmask 1043400
  %vm611 = vcmask 464900
  %vm612 = vmor %vm611, %vm610
  %613 = vst.msk [vmem:[#allocation2 + $0x78] sm:$0x77] %vm612, %v608
  %v614 = vld [vmem:[%s3 + $0x78] sm:$0x7]
  %616 = vrot.lane.b32.xlu0 %v614, 59
  %v617 = vpop.permute.xlu0 %616
  %vm619 = vcmask 1001944
  %620 = vst.msk [vmem:[#allocation2 + $0x7c] sm:$0x7] %vm619, %v617
  %v621 = vld [vmem:[%s3 + $0x78] sm:$0x7]
  %623 = vrot.lane.b32.xlu0 %v621, 61
  %v624 = vpop.permute.xlu0 %623
  %v625 = vrot.slane %v624, 4
  %vm626 = vcmask 498688
  %v627 = vsel %vm626, %v625, %v624
  %vm629 = vcmask 1043432
  %vm630 = vcmask 497668
  %vm631 = vmor %vm630, %vm629
  %632 = vst.msk [vmem:[#allocation2 + $0x7c] sm:$0x77] %vm631, %v627
  %v633 = vld [vmem:[%s3 + $0x7c] sm:$0x7]
  %635 = vrot.lane.b32.xlu0 %v633, 63
  %v636 = vpop.permute.xlu0 %635
  %vm638 = vcmask 1034744
  %639 = vst.msk [vmem:[#allocation2 + $0x80] sm:$0x7] %vm638, %v636
  %v640 = vld [vmem:[%s3 + $0x7c] sm:$0x7]
  %642 = vrot.lane.b32.xlu0 %v640, 65
  %v643 = vpop.permute.xlu0 %642
  %vm645 = vcmask 526344
  %646 = vst.msk [vmem:[#allocation2 + $0x84] sm:$0x7] %vm645, %v643
  %v647 = vld [vmem:[%s2] sm:$0xff]
  %v648 = vld [vmem:[%s1] sm:$0xff]
  %v649 = vld [vmem:[#allocation2] ss:$4 sm:$0xff]
  %s650 = scalar_lea.vmem [#allocation2], 32
  %v651 = vld [vmem:[%s650] ss:$4 sm:$0xff]
  %s652 = scalar_lea.vmem [#allocation2], 64
  %v653 = vld [vmem:[%s652] ss:$4 sm:$0xff]
  %s654 = scalar_lea.vmem [#allocation2], 96
  %v655 = vld [vmem:[%s654] ss:$4 sm:$0xff]
  %s656 = scalar_lea.vmem [#allocation2], 128
  %v657 = vld [vmem:[%s656] ss:$4 sm:$0x7]
  %659 = vset.pattern.permute.xlu0 0
  %660 = vperm.xlu0 %659, %v648
  %v661 = vpop.permute.xlu0 %660
  %v668 = vlaneseq
  %v669 = vshrl.u32 %v668, 7
  %v670 = vsub.s32 0, %v669
  %v671 = vrot.slane %v649, %v670
  %v672 = vlaneseq
  %v673 = vshrl.u32 %v672, 7
  %v674 = vsub.s32 1, %v673
  %v675 = vrot.slane %v649, %v674
  %v676 = vlaneseq
  %v677 = vshrl.u32 %v676, 7
  %v678 = vsub.s32 2, %v677
  %v679 = vrot.slane %v649, %v678
  %v680 = vlaneseq
  %v681 = vshrl.u32 %v680, 7
  %v682 = vsub.s32 3, %v681
  %v683 = vrot.slane %v649, %v682
  %v684 = vlaneseq
  %v685 = vshrl.u32 %v684, 7
  %v686 = vsub.s32 4, %v685
  %v687 = vrot.slane %v649, %v686
  %v688 = vlaneseq
  %v689 = vshrl.u32 %v688, 7
  %v690 = vsub.s32 5, %v689
  %v691 = vrot.slane %v649, %v690
  %v692 = vlaneseq
  %v693 = vshrl.u32 %v692, 7
  %v694 = vsub.s32 6, %v693
  %v695 = vrot.slane %v649, %v694
  %v696 = vlaneseq
  %v697 = vshrl.u32 %v696, 7
  %v698 = vsub.s32 7, %v697
  %v699 = vrot.slane %v649, %v698
  %v700 = vlaneseq
  %v701 = vshrl.u32 %v700, 7
  %v702 = vsub.s32 0, %v701
  %v703 = vrot.slane %v651, %v702
  %v704 = vlaneseq
  %v705 = vshrl.u32 %v704, 7
  %v706 = vsub.s32 1, %v705
  %v707 = vrot.slane %v651, %v706
  %v708 = vlaneseq
  %v709 = vshrl.u32 %v708, 7
  %v710 = vsub.s32 2, %v709
  %v711 = vrot.slane %v651, %v710
  %v712 = vlaneseq
  %v713 = vshrl.u32 %v712, 7
  %v714 = vsub.s32 3, %v713
  %v715 = vrot.slane %v651, %v714
  %v716 = vlaneseq
  %v717 = vshrl.u32 %v716, 7
  %v718 = vsub.s32 4, %v717
  %v719 = vrot.slane %v651, %v718
  %v720 = vlaneseq
  %v721 = vshrl.u32 %v720, 7
  %v722 = vsub.s32 5, %v721
  %v723 = vrot.slane %v651, %v722
  %v724 = vlaneseq
  %v725 = vshrl.u32 %v724, 7
  %v726 = vsub.s32 6, %v725
  %v727 = vrot.slane %v651, %v726
  %v728 = vlaneseq
  %v729 = vshrl.u32 %v728, 7
  %v730 = vsub.s32 7, %v729
  %v731 = vrot.slane %v651, %v730
  %v732 = vlaneseq
  %v733 = vshrl.u32 %v732, 7
  %v734 = vsub.s32 0, %v733
  %v735 = vrot.slane %v653, %v734
  %v736 = vlaneseq
  %v737 = vshrl.u32 %v736, 7
  %v738 = vsub.s32 1, %v737
  %v739 = vrot.slane %v653, %v738
  %v740 = vlaneseq
  %v741 = vshrl.u32 %v740, 7
  %v742 = vsub.s32 2, %v741
  %v743 = vrot.slane %v653, %v742
  %v744 = vlaneseq
  %v745 = vshrl.u32 %v744, 7
  %v746 = vsub.s32 3, %v745
  %v747 = vrot.slane %v653, %v746
  %v748 = vlaneseq
  %v749 = vshrl.u32 %v748, 7
  %v750 = vsub.s32 4, %v749
  %v751 = vrot.slane %v653, %v750
  %v752 = vlaneseq
  %v753 = vshrl.u32 %v752, 7
  %v754 = vsub.s32 5, %v753
  %v755 = vrot.slane %v653, %v754
  %v756 = vlaneseq
  %v757 = vshrl.u32 %v756, 7
  %v758 = vsub.s32 6, %v757
  %v759 = vrot.slane %v653, %v758
  %v760 = vlaneseq
  %v761 = vshrl.u32 %v760, 7
  %v762 = vsub.s32 7, %v761
  %v763 = vrot.slane %v653, %v762
  %v764 = vlaneseq
  %v765 = vshrl.u32 %v764, 7
  %v766 = vsub.s32 0, %v765
  %v767 = vrot.slane %v655, %v766
  %v768 = vlaneseq
  %v769 = vshrl.u32 %v768, 7
  %v770 = vsub.s32 1, %v769
  %v771 = vrot.slane %v655, %v770
  %v772 = vlaneseq
  %v773 = vshrl.u32 %v772, 7
  %v774 = vsub.s32 2, %v773
  %v775 = vrot.slane %v655, %v774
  %v776 = vlaneseq
  %v777 = vshrl.u32 %v776, 7
  %v778 = vsub.s32 3, %v777
  %v779 = vrot.slane %v655, %v778
  %v780 = vlaneseq
  %v781 = vshrl.u32 %v780, 7
  %v782 = vsub.s32 4, %v781
  %v783 = vrot.slane %v655, %v782
  %v784 = vlaneseq
  %v785 = vshrl.u32 %v784, 7
  %v786 = vsub.s32 5, %v785
  %v787 = vrot.slane %v655, %v786
  %v788 = vlaneseq
  %v789 = vshrl.u32 %v788, 7
  %v790 = vsub.s32 6, %v789
  %v791 = vrot.slane %v655, %v790
  %v792 = vlaneseq
  %v793 = vshrl.u32 %v792, 7
  %v794 = vsub.s32 7, %v793
  %v795 = vrot.slane %v655, %v794
  %v796 = vlaneseq
  %v797 = vshrl.u32 %v796, 7
  %v798 = vsub.s32 0, %v797
  %v799 = vrot.slane %v657, %v798
  %v800 = vlaneseq
  %v801 = vshrl.u32 %v800, 7
  %v802 = vsub.s32 1, %v801
  %v803 = vrot.slane %v657, %v802
  %v804 = vlaneseq
  %v805 = vshrl.u32 %v804, 7
  %v806 = vsub.s32 2, %v805
  %v807 = vrot.slane %v657, %v806
  %v843 = vmul.f32 %v661, %v671
  %v844 = vmul.f32 %v661, %v675
  %v845 = vmul.f32 %v661, %v679
  %v846 = vmul.f32 %v661, %v683
  %v847 = vmul.f32 %v661, %v687
  %v848 = vmul.f32 %v661, %v691
  %v849 = vmul.f32 %v661, %v695
  %v850 = vmul.f32 %v661, %v699
  %v851 = vmul.f32 %v661, %v703
  %v852 = vmul.f32 %v661, %v707
  %v853 = vmul.f32 %v661, %v711
  %v854 = vmul.f32 %v661, %v715
  %v855 = vmul.f32 %v661, %v719
  %v856 = vmul.f32 %v661, %v723
  %v857 = vmul.f32 %v661, %v727
  %v858 = vmul.f32 %v661, %v731
  %v859 = vmul.f32 %v661, %v735
  %v860 = vmul.f32 %v661, %v739
  %v861 = vmul.f32 %v661, %v743
  %v862 = vmul.f32 %v661, %v747
  %v863 = vmul.f32 %v661, %v751
  %v864 = vmul.f32 %v661, %v755
  %v865 = vmul.f32 %v661, %v759
  %v866 = vmul.f32 %v661, %v763
  %v867 = vmul.f32 %v661, %v767
  %v868 = vmul.f32 %v661, %v771
  %v869 = vmul.f32 %v661, %v775
  %v870 = vmul.f32 %v661, %v779
  %v871 = vmul.f32 %v661, %v783
  %v872 = vmul.f32 %v661, %v787
  %v873 = vmul.f32 %v661, %v791
  %v874 = vmul.f32 %v661, %v795
  %v875 = vmul.f32 %v661, %v799
  %v876 = vmul.f32 %v661, %v803
  %v877 = vmul.f32 %v661, %v807
  %879 = vset.pattern.permute.xlu0 0
  %880 = vperm.xlu0 %879, %v647
  %v881 = vpop.permute.xlu0 %880
  %v883 = vadd.f32 %v881, %v843
  %v884 = vadd.f32 %v881, %v844
  %v885 = vadd.f32 %v881, %v845
  %v886 = vadd.f32 %v881, %v846
  %v887 = vadd.f32 %v881, %v847
  %v888 = vadd.f32 %v881, %v848
  %v889 = vadd.f32 %v881, %v849
  %v890 = vadd.f32 %v881, %v850
  %v891 = vadd.f32 %v881, %v851
  %v892 = vadd.f32 %v881, %v852
  %v893 = vadd.f32 %v881, %v853
  %v894 = vadd.f32 %v881, %v854
  %v895 = vadd.f32 %v881, %v855
  %v896 = vadd.f32 %v881, %v856
  %v897 = vadd.f32 %v881, %v857
  %v898 = vadd.f32 %v881, %v858
  %v899 = vadd.f32 %v881, %v859
  %v900 = vadd.f32 %v881, %v860
  %v901 = vadd.f32 %v881, %v861
  %v902 = vadd.f32 %v881, %v862
  %v903 = vadd.f32 %v881, %v863
  %v904 = vadd.f32 %v881, %v864
  %v905 = vadd.f32 %v881, %v865
  %v906 = vadd.f32 %v881, %v866
  %v907 = vadd.f32 %v881, %v867
  %v908 = vadd.f32 %v881, %v868
  %v909 = vadd.f32 %v881, %v869
  %v910 = vadd.f32 %v881, %v870
  %v911 = vadd.f32 %v881, %v871
  %v912 = vadd.f32 %v881, %v872
  %v913 = vadd.f32 %v881, %v873
  %v914 = vadd.f32 %v881, %v874
  %v915 = vadd.f32 %v881, %v875
  %v916 = vadd.f32 %v881, %v876
  %v917 = vadd.f32 %v881, %v877
  %s918 = scalar_lea.vmem [#allocation2], 1
  %v919 = vld [vmem:[%s918] ss:$4 sm:$0xff]
  %s920 = scalar_lea.vmem [#allocation2], 33
  %v921 = vld [vmem:[%s920] ss:$4 sm:$0xff]
  %s922 = scalar_lea.vmem [#allocation2], 65
  %v923 = vld [vmem:[%s922] ss:$4 sm:$0xff]
  %s924 = scalar_lea.vmem [#allocation2], 97
  %v925 = vld [vmem:[%s924] ss:$4 sm:$0xff]
  %s926 = scalar_lea.vmem [#allocation2], 129
  %v927 = vld [vmem:[%s926] ss:$4 sm:$0x7]
  %928 = vset.pattern.permute.xlu0 1
  %929 = vperm.xlu0 %928, %v648
  %v930 = vpop.permute.xlu0 %929
  %v937 = vlaneseq
  %v938 = vshrl.u32 %v937, 7
  %v939 = vsub.s32 0, %v938
  %v940 = vrot.slane %v919, %v939
  %v941 = vlaneseq
  %v942 = vshrl.u32 %v941, 7
  %v943 = vsub.s32 1, %v942
  %v944 = vrot.slane %v919, %v943
  %v945 = vlaneseq
  %v946 = vshrl.u32 %v945, 7
  %v947 = vsub.s32 2, %v946
  %v948 = vrot.slane %v919, %v947
  %v949 = vlaneseq
  %v950 = vshrl.u32 %v949, 7
  %v951 = vsub.s32 3, %v950
  %v952 = vrot.slane %v919, %v951
  %v953 = vlaneseq
  %v954 = vshrl.u32 %v953, 7
  %v955 = vsub.s32 4, %v954
  %v956 = vrot.slane %v919, %v955
  %v957 = vlaneseq
  %v958 = vshrl.u32 %v957, 7
  %v959 = vsub.s32 5, %v958
  %v960 = vrot.slane %v919, %v959
  %v961 = vlaneseq
  %v962 = vshrl.u32 %v961, 7
  %v963 = vsub.s32 6, %v962
  %v964 = vrot.slane %v919, %v963
  %v965 = vlaneseq
  %v966 = vshrl.u32 %v965, 7
  %v967 = vsub.s32 7, %v966
  %v968 = vrot.slane %v919, %v967
  %v969 = vlaneseq
  %v970 = vshrl.u32 %v969, 7
  %v971 = vsub.s32 0, %v970
  %v972 = vrot.slane %v921, %v971
  %v973 = vlaneseq
  %v974 = vshrl.u32 %v973, 7
  %v975 = vsub.s32 1, %v974
  %v976 = vrot.slane %v921, %v975
  %v977 = vlaneseq
  %v978 = vshrl.u32 %v977, 7
  %v979 = vsub.s32 2, %v978
  %v980 = vrot.slane %v921, %v979
  %v981 = vlaneseq
  %v982 = vshrl.u32 %v981, 7
  %v983 = vsub.s32 3, %v982
  %v984 = vrot.slane %v921, %v983
  %v985 = vlaneseq
  %v986 = vshrl.u32 %v985, 7
  %v987 = vsub.s32 4, %v986
  %v988 = vrot.slane %v921, %v987
  %v989 = vlaneseq
  %v990 = vshrl.u32 %v989, 7
  %v991 = vsub.s32 5, %v990
  %v992 = vrot.slane %v921, %v991
  %v993 = vlaneseq
  %v994 = vshrl.u32 %v993, 7
  %v995 = vsub.s32 6, %v994
  %v996 = vrot.slane %v921, %v995
  %v997 = vlaneseq
  %v998 = vshrl.u32 %v997, 7
  %v999 = vsub.s32 7, %v998
  %v1000 = vrot.slane %v921, %v999
  %v1001 = vlaneseq
  %v1002 = vshrl.u32 %v1001, 7
  %v1003 = vsub.s32 0, %v1002
  %v1004 = vrot.slane %v923, %v1003
  %v1005 = vlaneseq
  %v1006 = vshrl.u32 %v1005, 7
  %v1007 = vsub.s32 1, %v1006
  %v1008 = vrot.slane %v923, %v1007
  %v1009 = vlaneseq
  %v1010 = vshrl.u32 %v1009, 7
  %v1011 = vsub.s32 2, %v1010
  %v1012 = vrot.slane %v923, %v1011
  %v1013 = vlaneseq
  %v1014 = vshrl.u32 %v1013, 7
  %v1015 = vsub.s32 3, %v1014
  %v1016 = vrot.slane %v923, %v1015
  %v1017 = vlaneseq
  %v1018 = vshrl.u32 %v1017, 7
  %v1019 = vsub.s32 4, %v1018
  %v1020 = vrot.slane %v923, %v1019
  %v1021 = vlaneseq
  %v1022 = vshrl.u32 %v1021, 7
  %v1023 = vsub.s32 5, %v1022
  %v1024 = vrot.slane %v923, %v1023
  %v1025 = vlaneseq
  %v1026 = vshrl.u32 %v1025, 7
  %v1027 = vsub.s32 6, %v1026
  %v1028 = vrot.slane %v923, %v1027
  %v1029 = vlaneseq
  %v1030 = vshrl.u32 %v1029, 7
  %v1031 = vsub.s32 7, %v1030
  %v1032 = vrot.slane %v923, %v1031
  %v1033 = vlaneseq
  %v1034 = vshrl.u32 %v1033, 7
  %v1035 = vsub.s32 0, %v1034
  %v1036 = vrot.slane %v925, %v1035
  %v1037 = vlaneseq
  %v1038 = vshrl.u32 %v1037, 7
  %v1039 = vsub.s32 1, %v1038
  %v1040 = vrot.slane %v925, %v1039
  %v1041 = vlaneseq
  %v1042 = vshrl.u32 %v1041, 7
  %v1043 = vsub.s32 2, %v1042
  %v1044 = vrot.slane %v925, %v1043
  %v1045 = vlaneseq
  %v1046 = vshrl.u32 %v1045, 7
  %v1047 = vsub.s32 3, %v1046
  %v1048 = vrot.slane %v925, %v1047
  %v1049 = vlaneseq
  %v1050 = vshrl.u32 %v1049, 7
  %v1051 = vsub.s32 4, %v1050
  %v1052 = vrot.slane %v925, %v1051
  %v1053 = vlaneseq
  %v1054 = vshrl.u32 %v1053, 7
  %v1055 = vsub.s32 5, %v1054
  %v1056 = vrot.slane %v925, %v1055
  %v1057 = vlaneseq
  %v1058 = vshrl.u32 %v1057, 7
  %v1059 = vsub.s32 6, %v1058
  %v1060 = vrot.slane %v925, %v1059
  %v1061 = vlaneseq
  %v1062 = vshrl.u32 %v1061, 7
  %v1063 = vsub.s32 7, %v1062
  %v1064 = vrot.slane %v925, %v1063
  %v1065 = vlaneseq
  %v1066 = vshrl.u32 %v1065, 7
  %v1067 = vsub.s32 0, %v1066
  %v1068 = vrot.slane %v927, %v1067
  %v1069 = vlaneseq
  %v1070 = vshrl.u32 %v1069, 7
  %v1071 = vsub.s32 1, %v1070
  %v1072 = vrot.slane %v927, %v1071
  %v1073 = vlaneseq
  %v1074 = vshrl.u32 %v1073, 7
  %v1075 = vsub.s32 2, %v1074
  %v1076 = vrot.slane %v927, %v1075
  %v1112 = vmul.f32 %v930, %v940
  %v1113 = vmul.f32 %v930, %v944
  %v1114 = vmul.f32 %v930, %v948
  %v1115 = vmul.f32 %v930, %v952
  %v1116 = vmul.f32 %v930, %v956
  %v1117 = vmul.f32 %v930, %v960
  %v1118 = vmul.f32 %v930, %v964
  %v1119 = vmul.f32 %v930, %v968
  %v1120 = vmul.f32 %v930, %v972
  %v1121 = vmul.f32 %v930, %v976
  %v1122 = vmul.f32 %v930, %v980
  %v1123 = vmul.f32 %v930, %v984
  %v1124 = vmul.f32 %v930, %v988
  %v1125 = vmul.f32 %v930, %v992
  %v1126 = vmul.f32 %v930, %v996
  %v1127 = vmul.f32 %v930, %v1000
  %v1128 = vmul.f32 %v930, %v1004
  %v1129 = vmul.f32 %v930, %v1008
  %v1130 = vmul.f32 %v930, %v1012
  %v1131 = vmul.f32 %v930, %v1016
  %v1132 = vmul.f32 %v930, %v1020
  %v1133 = vmul.f32 %v930, %v1024
  %v1134 = vmul.f32 %v930, %v1028
  %v1135 = vmul.f32 %v930, %v1032
  %v1136 = vmul.f32 %v930, %v1036
  %v1137 = vmul.f32 %v930, %v1040
  %v1138 = vmul.f32 %v930, %v1044
  %v1139 = vmul.f32 %v930, %v1048
  %v1140 = vmul.f32 %v930, %v1052
  %v1141 = vmul.f32 %v930, %v1056
  %v1142 = vmul.f32 %v930, %v1060
  %v1143 = vmul.f32 %v930, %v1064
  %v1144 = vmul.f32 %v930, %v1068
  %v1145 = vmul.f32 %v930, %v1072
  %v1146 = vmul.f32 %v930, %v1076
  %v1147 = vadd.f32 %v883, %v1112
  %v1148 = vadd.f32 %v884, %v1113
  %v1149 = vadd.f32 %v885, %v1114
  %v1150 = vadd.f32 %v886, %v1115
  %v1151 = vadd.f32 %v887, %v1116
  %v1152 = vadd.f32 %v888, %v1117
  %v1153 = vadd.f32 %v889, %v1118
  %v1154 = vadd.f32 %v890, %v1119
  %v1155 = vadd.f32 %v891, %v1120
  %v1156 = vadd.f32 %v892, %v1121
  %v1157 = vadd.f32 %v893, %v1122
  %v1158 = vadd.f32 %v894, %v1123
  %v1159 = vadd.f32 %v895, %v1124
  %v1160 = vadd.f32 %v896, %v1125
  %v1161 = vadd.f32 %v897, %v1126
  %v1162 = vadd.f32 %v898, %v1127
  %v1163 = vadd.f32 %v899, %v1128
  %v1164 = vadd.f32 %v900, %v1129
  %v1165 = vadd.f32 %v901, %v1130
  %v1166 = vadd.f32 %v902, %v1131
  %v1167 = vadd.f32 %v903, %v1132
  %v1168 = vadd.f32 %v904, %v1133
  %v1169 = vadd.f32 %v905, %v1134
  %v1170 = vadd.f32 %v906, %v1135
  %v1171 = vadd.f32 %v907, %v1136
  %v1172 = vadd.f32 %v908, %v1137
  %v1173 = vadd.f32 %v909, %v1138
  %v1174 = vadd.f32 %v910, %v1139
  %v1175 = vadd.f32 %v911, %v1140
  %v1176 = vadd.f32 %v912, %v1141
  %v1177 = vadd.f32 %v913, %v1142
  %v1178 = vadd.f32 %v914, %v1143
  %v1179 = vadd.f32 %v915, %v1144
  %v1180 = vadd.f32 %v916, %v1145
  %v1181 = vadd.f32 %v917, %v1146
  %s1182 = scalar_lea.vmem [#allocation2], 2
  %v1183 = vld [vmem:[%s1182] ss:$4 sm:$0xff]
  %s1184 = scalar_lea.vmem [#allocation2], 34
  %v1185 = vld [vmem:[%s1184] ss:$4 sm:$0xff]
  %s1186 = scalar_lea.vmem [#allocation2], 66
  %v1187 = vld [vmem:[%s1186] ss:$4 sm:$0xff]
  %s1188 = scalar_lea.vmem [#allocation2], 98
  %v1189 = vld [vmem:[%s1188] ss:$4 sm:$0xff]
  %s1190 = scalar_lea.vmem [#allocation2], 130
  %v1191 = vld [vmem:[%s1190] ss:$4 sm:$0x7]
  %1192 = vset.pattern.permute.xlu0 2
  %1193 = vperm.xlu0 %1192, %v648
  %v1194 = vpop.permute.xlu0 %1193
  %v1201 = vlaneseq
  %v1202 = vshrl.u32 %v1201, 7
  %v1203 = vsub.s32 0, %v1202
  %v1204 = vrot.slane %v1183, %v1203
  %v1205 = vlaneseq
  %v1206 = vshrl.u32 %v1205, 7
  %v1207 = vsub.s32 1, %v1206
  %v1208 = vrot.slane %v1183, %v1207
  %v1209 = vlaneseq
  %v1210 = vshrl.u32 %v1209, 7
  %v1211 = vsub.s32 2, %v1210
  %v1212 = vrot.slane %v1183, %v1211
  %v1213 = vlaneseq
  %v1214 = vshrl.u32 %v1213, 7
  %v1215 = vsub.s32 3, %v1214
  %v1216 = vrot.slane %v1183, %v1215
  %v1217 = vlaneseq
  %v1218 = vshrl.u32 %v1217, 7
  %v1219 = vsub.s32 4, %v1218
  %v1220 = vrot.slane %v1183, %v1219
  %v1221 = vlaneseq
  %v1222 = vshrl.u32 %v1221, 7
  %v1223 = vsub.s32 5, %v1222
  %v1224 = vrot.slane %v1183, %v1223
  %v1225 = vlaneseq
  %v1226 = vshrl.u32 %v1225, 7
  %v1227 = vsub.s32 6, %v1226
  %v1228 = vrot.slane %v1183, %v1227
  %v1229 = vlaneseq
  %v1230 = vshrl.u32 %v1229, 7
  %v1231 = vsub.s32 7, %v1230
  %v1232 = vrot.slane %v1183, %v1231
  %v1233 = vlaneseq
  %v1234 = vshrl.u32 %v1233, 7
  %v1235 = vsub.s32 0, %v1234
  %v1236 = vrot.slane %v1185, %v1235
  %v1237 = vlaneseq
  %v1238 = vshrl.u32 %v1237, 7
  %v1239 = vsub.s32 1, %v1238
  %v1240 = vrot.slane %v1185, %v1239
  %v1241 = vlaneseq
  %v1242 = vshrl.u32 %v1241, 7
  %v1243 = vsub.s32 2, %v1242
  %v1244 = vrot.slane %v1185, %v1243
  %v1245 = vlaneseq
  %v1246 = vshrl.u32 %v1245, 7
  %v1247 = vsub.s32 3, %v1246
  %v1248 = vrot.slane %v1185, %v1247
  %v1249 = vlaneseq
  %v1250 = vshrl.u32 %v1249, 7
  %v1251 = vsub.s32 4, %v1250
  %v1252 = vrot.slane %v1185, %v1251
  %v1253 = vlaneseq
  %v1254 = vshrl.u32 %v1253, 7
  %v1255 = vsub.s32 5, %v1254
  %v1256 = vrot.slane %v1185, %v1255
  %v1257 = vlaneseq
  %v1258 = vshrl.u32 %v1257, 7
  %v1259 = vsub.s32 6, %v1258
  %v1260 = vrot.slane %v1185, %v1259
  %v1261 = vlaneseq
  %v1262 = vshrl.u32 %v1261, 7
  %v1263 = vsub.s32 7, %v1262
  %v1264 = vrot.slane %v1185, %v1263
  %v1265 = vlaneseq
  %v1266 = vshrl.u32 %v1265, 7
  %v1267 = vsub.s32 0, %v1266
  %v1268 = vrot.slane %v1187, %v1267
  %v1269 = vlaneseq
  %v1270 = vshrl.u32 %v1269, 7
  %v1271 = vsub.s32 1, %v1270
  %v1272 = vrot.slane %v1187, %v1271
  %v1273 = vlaneseq
  %v1274 = vshrl.u32 %v1273, 7
  %v1275 = vsub.s32 2, %v1274
  %v1276 = vrot.slane %v1187, %v1275
  %v1277 = vlaneseq
  %v1278 = vshrl.u32 %v1277, 7
  %v1279 = vsub.s32 3, %v1278
  %v1280 = vrot.slane %v1187, %v1279
  %v1281 = vlaneseq
  %v1282 = vshrl.u32 %v1281, 7
  %v1283 = vsub.s32 4, %v1282
  %v1284 = vrot.slane %v1187, %v1283
  %v1285 = vlaneseq
  %v1286 = vshrl.u32 %v1285, 7
  %v1287 = vsub.s32 5, %v1286
  %v1288 = vrot.slane %v1187, %v1287
  %v1289 = vlaneseq
  %v1290 = vshrl.u32 %v1289, 7
  %v1291 = vsub.s32 6, %v1290
  %v1292 = vrot.slane %v1187, %v1291
  %v1293 = vlaneseq
  %v1294 = vshrl.u32 %v1293, 7
  %v1295 = vsub.s32 7, %v1294
  %v1296 = vrot.slane %v1187, %v1295
  %v1297 = vlaneseq
  %v1298 = vshrl.u32 %v1297, 7
  %v1299 = vsub.s32 0, %v1298
  %v1300 = vrot.slane %v1189, %v1299
  %v1301 = vlaneseq
  %v1302 = vshrl.u32 %v1301, 7
  %v1303 = vsub.s32 1, %v1302
  %v1304 = vrot.slane %v1189, %v1303
  %v1305 = vlaneseq
  %v1306 = vshrl.u32 %v1305, 7
  %v1307 = vsub.s32 2, %v1306
  %v1308 = vrot.slane %v1189, %v1307
  %v1309 = vlaneseq
  %v1310 = vshrl.u32 %v1309, 7
  %v1311 = vsub.s32 3, %v1310
  %v1312 = vrot.slane %v1189, %v1311
  %v1313 = vlaneseq
  %v1314 = vshrl.u32 %v1313, 7
  %v1315 = vsub.s32 4, %v1314
  %v1316 = vrot.slane %v1189, %v1315
  %v1317 = vlaneseq
  %v1318 = vshrl.u32 %v1317, 7
  %v1319 = vsub.s32 5, %v1318
  %v1320 = vrot.slane %v1189, %v1319
  %v1321 = vlaneseq
  %v1322 = vshrl.u32 %v1321, 7
  %v1323 = vsub.s32 6, %v1322
  %v1324 = vrot.slane %v1189, %v1323
  %v1325 = vlaneseq
  %v1326 = vshrl.u32 %v1325, 7
  %v1327 = vsub.s32 7, %v1326
  %v1328 = vrot.slane %v1189, %v1327
  %v1329 = vlaneseq
  %v1330 = vshrl.u32 %v1329, 7
  %v1331 = vsub.s32 0, %v1330
  %v1332 = vrot.slane %v1191, %v1331
  %v1333 = vlaneseq
  %v1334 = vshrl.u32 %v1333, 7
  %v1335 = vsub.s32 1, %v1334
  %v1336 = vrot.slane %v1191, %v1335
  %v1337 = vlaneseq
  %v1338 = vshrl.u32 %v1337, 7
  %v1339 = vsub.s32 2, %v1338
  %v1340 = vrot.slane %v1191, %v1339
  %v1376 = vmul.f32 %v1194, %v1204
  %v1377 = vmul.f32 %v1194, %v1208
  %v1378 = vmul.f32 %v1194, %v1212
  %v1379 = vmul.f32 %v1194, %v1216
  %v1380 = vmul.f32 %v1194, %v1220
  %v1381 = vmul.f32 %v1194, %v1224
  %v1382 = vmul.f32 %v1194, %v1228
  %v1383 = vmul.f32 %v1194, %v1232
  %v1384 = vmul.f32 %v1194, %v1236
  %v1385 = vmul.f32 %v1194, %v1240
  %v1386 = vmul.f32 %v1194, %v1244
  %v1387 = vmul.f32 %v1194, %v1248
  %v1388 = vmul.f32 %v1194, %v1252
  %v1389 = vmul.f32 %v1194, %v1256
  %v1390 = vmul.f32 %v1194, %v1260
  %v1391 = vmul.f32 %v1194, %v1264
  %v1392 = vmul.f32 %v1194, %v1268
  %v1393 = vmul.f32 %v1194, %v1272
  %v1394 = vmul.f32 %v1194, %v1276
  %v1395 = vmul.f32 %v1194, %v1280
  %v1396 = vmul.f32 %v1194, %v1284
  %v1397 = vmul.f32 %v1194, %v1288
  %v1398 = vmul.f32 %v1194, %v1292
  %v1399 = vmul.f32 %v1194, %v1296
  %v1400 = vmul.f32 %v1194, %v1300
  %v1401 = vmul.f32 %v1194, %v1304
  %v1402 = vmul.f32 %v1194, %v1308
  %v1403 = vmul.f32 %v1194, %v1312
  %v1404 = vmul.f32 %v1194, %v1316
  %v1405 = vmul.f32 %v1194, %v1320
  %v1406 = vmul.f32 %v1194, %v1324
  %v1407 = vmul.f32 %v1194, %v1328
  %v1408 = vmul.f32 %v1194, %v1332
  %v1409 = vmul.f32 %v1194, %v1336
  %v1410 = vmul.f32 %v1194, %v1340
  %v1411 = vadd.f32 %v1147, %v1376
  %v1412 = vadd.f32 %v1148, %v1377
  %v1413 = vadd.f32 %v1149, %v1378
  %v1414 = vadd.f32 %v1150, %v1379
  %v1415 = vadd.f32 %v1151, %v1380
  %v1416 = vadd.f32 %v1152, %v1381
  %v1417 = vadd.f32 %v1153, %v1382
  %v1418 = vadd.f32 %v1154, %v1383
  %v1419 = vadd.f32 %v1155, %v1384
  %v1420 = vadd.f32 %v1156, %v1385
  %v1421 = vadd.f32 %v1157, %v1386
  %v1422 = vadd.f32 %v1158, %v1387
  %v1423 = vadd.f32 %v1159, %v1388
  %v1424 = vadd.f32 %v1160, %v1389
  %v1425 = vadd.f32 %v1161, %v1390
  %v1426 = vadd.f32 %v1162, %v1391
  %v1427 = vadd.f32 %v1163, %v1392
  %v1428 = vadd.f32 %v1164, %v1393
  %v1429 = vadd.f32 %v1165, %v1394
  %v1430 = vadd.f32 %v1166, %v1395
  %v1431 = vadd.f32 %v1167, %v1396
  %v1432 = vadd.f32 %v1168, %v1397
  %v1433 = vadd.f32 %v1169, %v1398
  %v1434 = vadd.f32 %v1170, %v1399
  %v1435 = vadd.f32 %v1171, %v1400
  %v1436 = vadd.f32 %v1172, %v1401
  %v1437 = vadd.f32 %v1173, %v1402
  %v1438 = vadd.f32 %v1174, %v1403
  %v1439 = vadd.f32 %v1175, %v1404
  %v1440 = vadd.f32 %v1176, %v1405
  %v1441 = vadd.f32 %v1177, %v1406
  %v1442 = vadd.f32 %v1178, %v1407
  %v1443 = vadd.f32 %v1179, %v1408
  %v1444 = vadd.f32 %v1180, %v1409
  %v1445 = vadd.f32 %v1181, %v1410
  %s1446 = sld [smem:[#allocation3]]
  %s1447 = scvt.s32.f32 %s1446
  %1448 = vst [vmem:[%s5] sm:$0xff] %v1411
  %1449 = vst [vmem:[%s5 + $0x8] sm:$0xff] %v1412
  %1450 = vst [vmem:[%s5 + $0x10] sm:$0xff] %v1413
  %1451 = vst [vmem:[%s5 + $0x18] sm:$0xff] %v1414
  %1452 = vst [vmem:[%s5 + $0x20] sm:$0xff] %v1415
  %1453 = vst [vmem:[%s5 + $0x28] sm:$0xff] %v1416
  %1454 = vst [vmem:[%s5 + $0x30] sm:$0xff] %v1417
  %1455 = vst [vmem:[%s5 + $0x38] sm:$0xff] %v1418
  %1456 = vst [vmem:[%s5 + $0x40] sm:$0xff] %v1419
  %1457 = vst [vmem:[%s5 + $0x48] sm:$0xff] %v1420
  %1458 = vst [vmem:[%s5 + $0x50] sm:$0xff] %v1421
  %1459 = vst [vmem:[%s5 + $0x58] sm:$0xff] %v1422
  %1460 = vst [vmem:[%s5 + $0x60] sm:$0xff] %v1423
  %1461 = vst [vmem:[%s5 + $0x68] sm:$0xff] %v1424
  %1462 = vst [vmem:[%s5 + $0x70] sm:$0xff] %v1425
  %1463 = vst [vmem:[%s5 + $0x78] sm:$0xff] %v1426
  %1464 = vst [vmem:[%s5 + $0x80] sm:$0xff] %v1427
  %1465 = vst [vmem:[%s5 + $0x88] sm:$0xff] %v1428
  %1466 = vst [vmem:[%s5 + $0x90] sm:$0xff] %v1429
  %1467 = vst [vmem:[%s5 + $0x98] sm:$0xff] %v1430
  %1468 = vst [vmem:[%s5 + $0xa0] sm:$0xff] %v1431
  %1469 = vst [vmem:[%s5 + $0xa8] sm:$0xff] %v1432
  %1470 = vst [vmem:[%s5 + $0xb0] sm:$0xff] %v1433
  %1471 = vst [vmem:[%s5 + $0xb8] sm:$0xff] %v1434
  %1472 = vst [vmem:[%s5 + $0xc0] sm:$0xff] %v1435
  %1473 = vst [vmem:[%s5 + $0xc8] sm:$0xff] %v1436
  %1474 = vst [vmem:[%s5 + $0xd0] sm:$0xff] %v1437
  %1475 = vst [vmem:[%s5 + $0xd8] sm:$0xff] %v1438
  %1476 = vst [vmem:[%s5 + $0xe0] sm:$0xff] %v1439
  %1477 = vst [vmem:[%s5 + $0xe8] sm:$0xff] %v1440
  %1478 = vst [vmem:[%s5 + $0xf0] sm:$0xff] %v1441
  %1479 = vst [vmem:[%s5 + $0xf8] sm:$0xff] %v1442
  %1480 = vst [vmem:[%s5 + $0x100] sm:$0xff] %v1443
  %1481 = vst [vmem:[%s5 + $0x108] sm:$0xff] %v1444
  %vm1482 = vcmask 31744
  %1483 = vst.msk [vmem:[%s5 + $0x110] sm:$0xff] %vm1482, %v1445
  %v1484 = vstv %s1447
  %v1485 = vadd.f32 %v1411, %v1484
  %v1486 = vadd.f32 %v1412, %v1484
  %v1487 = vadd.f32 %v1413, %v1484
  %v1488 = vadd.f32 %v1414, %v1484
  %v1489 = vadd.f32 %v1415, %v1484
  %v1490 = vadd.f32 %v1416, %v1484
  %v1491 = vadd.f32 %v1417, %v1484
  %v1492 = vadd.f32 %v1418, %v1484
  %v1493 = vadd.f32 %v1419, %v1484
  %v1494 = vadd.f32 %v1420, %v1484
  %v1495 = vadd.f32 %v1421, %v1484
  %v1496 = vadd.f32 %v1422, %v1484
  %v1497 = vadd.f32 %v1423, %v1484
  %v1498 = vadd.f32 %v1424, %v1484
  %v1499 = vadd.f32 %v1425, %v1484
  %v1500 = vadd.f32 %v1426, %v1484
  %v1501 = vadd.f32 %v1427, %v1484
  %v1502 = vadd.f32 %v1428, %v1484
  %v1503 = vadd.f32 %v1429, %v1484
  %v1504 = vadd.f32 %v1430, %v1484
  %v1505 = vadd.f32 %v1431, %v1484
  %v1506 = vadd.f32 %v1432, %v1484
  %v1507 = vadd.f32 %v1433, %v1484
  %v1508 = vadd.f32 %v1434, %v1484
  %v1509 = vadd.f32 %v1435, %v1484
  %v1510 = vadd.f32 %v1436, %v1484
  %v1511 = vadd.f32 %v1437, %v1484
  %v1512 = vadd.f32 %v1438, %v1484
  %v1513 = vadd.f32 %v1439, %v1484
  %v1514 = vadd.f32 %v1440, %v1484
  %v1515 = vadd.f32 %v1441, %v1484
  %v1516 = vadd.f32 %v1442, %v1484
  %v1517 = vadd.f32 %v1443, %v1484
  %v1518 = vadd.f32 %v1444, %v1484
  %v1519 = vadd.f32 %v1445, %v1484
  %1520 = vst [vmem:[%s4] sm:$0xff] %v1485
  %1521 = vst [vmem:[%s4 + $0x8] sm:$0xff] %v1486
  %1522 = vst [vmem:[%s4 + $0x10] sm:$0xff] %v1487
  %1523 = vst [vmem:[%s4 + $0x18] sm:$0xff] %v1488
  %1524 = vst [vmem:[%s4 + $0x20] sm:$0xff] %v1489
  %1525 = vst [vmem:[%s4 + $0x28] sm:$0xff] %v1490
  %1526 = vst [vmem:[%s4 + $0x30] sm:$0xff] %v1491
  %1527 = vst [vmem:[%s4 + $0x38] sm:$0xff] %v1492
  %1528 = vst [vmem:[%s4 + $0x40] sm:$0xff] %v1493
  %1529 = vst [vmem:[%s4 + $0x48] sm:$0xff] %v1494
  %1530 = vst [vmem:[%s4 + $0x50] sm:$0xff] %v1495
  %1531 = vst [vmem:[%s4 + $0x58] sm:$0xff] %v1496
  %1532 = vst [vmem:[%s4 + $0x60] sm:$0xff] %v1497
  %1533 = vst [vmem:[%s4 + $0x68] sm:$0xff] %v1498
  %1534 = vst [vmem:[%s4 + $0x70] sm:$0xff] %v1499
  %1535 = vst [vmem:[%s4 + $0x78] sm:$0xff] %v1500
  %1536 = vst [vmem:[%s4 + $0x80] sm:$0xff] %v1501
  %1537 = vst [vmem:[%s4 + $0x88] sm:$0xff] %v1502
  %1538 = vst [vmem:[%s4 + $0x90] sm:$0xff] %v1503
  %1539 = vst [vmem:[%s4 + $0x98] sm:$0xff] %v1504
  %1540 = vst [vmem:[%s4 + $0xa0] sm:$0xff] %v1505
  %1541 = vst [vmem:[%s4 + $0xa8] sm:$0xff] %v1506
  %1542 = vst [vmem:[%s4 + $0xb0] sm:$0xff] %v1507
  %1543 = vst [vmem:[%s4 + $0xb8] sm:$0xff] %v1508
  %1544 = vst [vmem:[%s4 + $0xc0] sm:$0xff] %v1509
  %1545 = vst [vmem:[%s4 + $0xc8] sm:$0xff] %v1510
  %1546 = vst [vmem:[%s4 + $0xd0] sm:$0xff] %v1511
  %1547 = vst [vmem:[%s4 + $0xd8] sm:$0xff] %v1512
  %1548 = vst [vmem:[%s4 + $0xe0] sm:$0xff] %v1513
  %1549 = vst [vmem:[%s4 + $0xe8] sm:$0xff] %v1514
  %1550 = vst [vmem:[%s4 + $0xf0] sm:$0xff] %v1515
  %1551 = vst [vmem:[%s4 + $0xf8] sm:$0xff] %v1516
  %1552 = vst [vmem:[%s4 + $0x100] sm:$0xff] %v1517
  %1553 = vst [vmem:[%s4 + $0x108] sm:$0xff] %v1518
  %1554 = vst.msk [vmem:[%s4 + $0x110] sm:$0xff] %vm1482, %v1519
  // Predicated region
  $region18: #{model_forward.1} parent=0 // pred_check
    _
  $region19: #{model_forward.1} parent=0 // pred_check_branch
    %1556 = sbr.rel (0) target = $region21
  $region20: #{model_forward.1} parent=0 // pred_region
    _
  $region21: #{model_forward.1} parent=0 // pred_fallthru
    _
  // Predicated region
  $region22: #{model_forward.1} parent=0 // pred_check
    _
  $region23: #{model_forward.1} parent=0 // pred_check_branch
    %1558 = sbr.rel (0) target = $region25
  $region24: #{model_forward.1} parent=0 // pred_region
    _
  $region25: #{model_forward.1} parent=0 // pred_fallthru
    _
  // Predicated region
  $region26: #{model_forward.1} parent=0 // pred_check
    _
  $region27: #{model_forward.1} parent=0 // pred_check_branch
    %1560 = sbr.rel (0) target = $region29
  $region28: #{model_forward.1} parent=0 // pred_region
    _
  $region29: #{model_forward.1} parent=0 // pred_fallthru
    _
  // Predicated region
  $region30: #{model_forward.1} parent=0 // pred_check
    _
  $region31: #{model_forward.1} parent=0 // pred_check_branch
    %1562 = sbr.rel (0) target = $region33
  $region32: #{model_forward.1} parent=0 // pred_region
    _
  $region33: #{model_forward.1} parent=0 // pred_fallthru
    _

</llo_original>
